<compile_context>
chip_gen: v7x
topology: tpu7x:2x2x1
jax: 0.10.0
libtpu: 0.0.40
codegen_flags: <defaults>
</compile_context>

<pallas_src>
import functools

import jax
import jax.numpy as jnp
import numpy as np
from jax.experimental import pallas as pl
from jax.experimental.pallas import tpu as pltpu


def _round_up(v, m):
    return (v + m - 1) // m * m


def _cdiv(a, b):
    return -(-a // b)


def _vmem_limit_bytes():
    """Per-generation VMEM budget: ~3/4 of physical, capped at 100 MiB."""
    try:
        cap = int(pltpu.get_tpu_info().vmem_capacity_bytes)
        return min(100 * 1024 * 1024, (cap * 3) // 4)
    except Exception:
        return 64 * 1024 * 1024


def _pick_batch_tile(B, batch_tile):
    """Balanced batch tiles; prefer >= 2 tiles for larger batches (megacore)."""
    B8 = _round_up(max(B, 1), 8)
    cap = _round_up(min(max(batch_tile, 8), B8), 8)
    if B8 >= 64 and _cdiv(B8, cap) < 2:
        cap = _round_up(_cdiv(B8, 2), 8)          # feed both TensorCores
    n = _cdiv(B8, cap)
    TB = _round_up(_cdiv(B8, n), 8)               # balanced -> minimal padding
    return TB, n * TB


def _eeg_kernel(x_ref, w1_ref, b1_ref, w2_ref, b2_ref, fcw_ref, fcb_ref,
                out_ref, xt_ref, acc_ref, *, lt, l_real):
    k = pl.program_id(1)
    TB = x_ref.shape[0]
    C1 = w1_ref.shape[1]              # 32
    C2 = w2_ref.shape[2]              # 64

    @pl.when(k == 0)
    def _():
        # One-time (per batch tile) relayout: batch-major -> sequence-major.
        xt_ref[...] = jnp.transpose(x_ref[...], (1, 0))
        acc_ref[...] = jnp.zeros_like(acc_ref)

    # x window for this L-chunk (+2 halo columns each side cover conv1+conv2).
    start = pl.multiple_of(k * lt, 8)             # lt is a multiple of 8
    xw = xt_ref[pl.ds(start, lt + 4), :]          # [lt+4, TB]
    xb = xw[:, :, None]                           # [lt+4, TB, 1]

    # conv1 (1 -> C1, k=3, pad=1) on the extended chunk, ReLU (VPU broadcasts).
    h1 = (xb[0:lt + 2] * w1_ref[0:1, :]
          + xb[1:lt + 3] * w1_ref[1:2, :]
          + xb[2:lt + 4] * w1_ref[2:3, :]
          + b1_ref[...])
    h1 = jnp.maximum(h1, 0.0)                     # [lt+2, TB, C1]

    # Zero the halo / padded rows outside [0, L): they act as conv2's zero
    # padding and neutralise the L -> L_pad padding of the last chunk.
    pos = (k * lt - 1) + jax.lax.broadcasted_iota(jnp.int32, (lt + 2, C1), 0)
    valid = ((pos >= 0) & (pos < l_real)).astype(jnp.float32)   # [lt+2, C1]
    h1 = h1 * valid[:, None, :]

    # conv2 (C1 -> C2, k=3, pad=1): three per-tap MXU matmuls, no im2col copy.
    m = lt * TB
    h2 = jnp.dot(h1[0:lt].reshape(m, C1), w2_ref[0],
                 preferred_element_type=jnp.float32)
    h2 = h2 + jnp.dot(h1[1:lt + 1].reshape(m, C1), w2_ref[1],
                      preferred_element_type=jnp.float32)
    h2 = h2 + jnp.dot(h1[2:lt + 2].reshape(m, C1), w2_ref[2],
                      preferred_element_type=jnp.float32)
    h2 = jnp.maximum(h2 + b2_ref[...], 0.0).reshape(lt, TB, C2)

    # fc contribution of this L-chunk (PyTorch channel-major flatten folded
    # into the fcw permutation at load time): batched-over-l MXU matmul,
    # folded into the resident accumulator.
    p = jnp.einsum('lbc,lce->lbe', h2, fcw_ref[...],
                   preferred_element_type=jnp.float32)          # [lt, TB, E_pad]
    acc_ref[...] += jnp.sum(p, axis=0)

    @pl.when(k == pl.num_programs(1) - 1)
    def _():
        out_ref[...] = acc_ref[...] + fcb_ref[...]


def pack_params(w1, b1, w2, b2, fcw, fcb, *, l_tile=64):
    """One-time (load-time) parameter packing for the kernel layout."""
    C1 = w1.shape[0]                  # 32
    C2 = w2.shape[0]                  # 64
    E = fcw.shape[0]                  # embedding_dim
    L = fcw.shape[1] // C2            # input_dim
    E_pad = _round_up(E, 128)
    LT = min(_round_up(l_tile, 8), _round_up(L, 8))
    L_pad = _round_up(L, LT)

    w1p = jnp.transpose(w1[:, 0, :], (1, 0)).astype(jnp.float32)      # [3, C1]
    b1p = b1.astype(jnp.float32)[None, :]                             # [1, C1]
    # per-tap conv2 weights: w2p[t, c1, c2] = w2[c2, c1, t]
    w2p = jnp.transpose(w2, (2, 1, 0)).astype(jnp.float32)            # [3, C1, C2]
    b2p = b2.astype(jnp.float32)[None, :]                             # [1, C2]
    # PyTorch flatten index is c*L + l  ->  fcw3[l, c, e] = fcw[e, c*L + l]
    fcw3 = jnp.transpose(fcw.reshape(E, C2, L), (2, 1, 0))            # [L, C2, E]
    fcw3 = jnp.pad(fcw3, ((0, L_pad - L), (0, 0), (0, E_pad - E)))
    fcbp = jnp.pad(fcb, (0, E_pad - E)).astype(jnp.float32)[None, :]  # [1, E_pad]
    return dict(w1=w1p, b1=b1p, w2=w2p, b2=b2p,
                fcw=fcw3.astype(jnp.float32), fcb=fcbp,
                C1=C1, C2=C2, E=E, E_pad=E_pad, L=L, L_pad=L_pad, LT=LT)


def eeg_embedding_forward(x, params, *, batch_tile=128):
    """x: [B, 1, L] float32 (PyTorch NCL).  Returns [B, embedding_dim]."""
    B, Cin, L = x.shape
    assert Cin == 1 and L == params["L"]
    C1, C2 = params["C1"], params["C2"]
    E, E_pad = params["E"], params["E_pad"]
    L_pad, LT = params["L_pad"], params["LT"]

    TB, B_pad = _pick_batch_tile(B, batch_tile)
    nt, nk = B_pad // TB, L_pad // LT

    # Lane-dense, batch-major input: [B_pad, L_pad + 4]; data in cols [2, 2+L).
    xs = jnp.pad(x[:, 0, :].astype(jnp.float32),
                 ((0, B_pad - B), (2, L_pad + 2 - L)))

    flops = int(2 * B_pad * L_pad * (3 * C1 + 3 * C1 * C2 + C2 * E_pad))
    bytes_accessed = int(4 * (xs.size + params["w1"].size + params["w2"].size
                              + nt * params["fcw"].size + B_pad * E_pad))

    kernel = functools.partial(_eeg_kernel, lt=LT, l_real=L)

    out = pl.pallas_call(
        kernel,
        out_shape=jax.ShapeDtypeStruct((B_pad, E_pad), jnp.float32),
        grid_spec=pltpu.PrefetchScalarGridSpec(
            num_scalar_prefetch=0,
            grid=(nt, nk),
            in_specs=[
                pl.BlockSpec((TB, L_pad + 4), lambda t, k: (t, 0)),      # x
                pl.BlockSpec((3, C1), lambda t, k: (0, 0)),              # conv1 w
                pl.BlockSpec((1, C1), lambda t, k: (0, 0)),              # conv1 b
                pl.BlockSpec((3, C1, C2), lambda t, k: (0, 0, 0)),       # conv2 w
                pl.BlockSpec((1, C2), lambda t, k: (0, 0)),              # conv2 b
                pl.BlockSpec((LT, C2, E_pad), lambda t, k: (k, 0, 0)),   # fc w (L-tiled)
                pl.BlockSpec((1, E_pad), lambda t, k: (0, 0)),           # fc b
            ],
            out_specs=pl.BlockSpec((TB, E_pad), lambda t, k: (t, 0)),
            scratch_shapes=[
                pltpu.VMEM((L_pad + 4, TB), jnp.float32),   # sequence-major x
                pltpu.VMEM((TB, E_pad), jnp.float32),       # fc accumulator
            ],
        ),
        compiler_params=pltpu.CompilerParams(
            dimension_semantics=("parallel", "arbitrary"),
            vmem_limit_bytes=_vmem_limit_bytes(),
        ),
        cost_estimate=pl.CostEstimate(
            flops=flops, transcendentals=0, bytes_accessed=bytes_accessed),
    )(xs, params["w1"], params["b1"], params["w2"], params["b2"],
      params["fcw"], params["fcb"])
    return out[:B, :E]


def reference_forward(x, w1, b1, w2, b2, fcw, fcb):
    """Pure-JAX reference matching the PyTorch module semantics."""
    def conv1d(h, w, b):                       # h [B,Cin,L], w [Cout,Cin,3], pad=1
        Lh = h.shape[2]
        hp = jnp.pad(h, ((0, 0), (0, 0), (1, 1)))
        out = jnp.zeros((h.shape[0], w.shape[0], Lh), dtype=jnp.float32)
        for k in range(3):
            out = out + jnp.einsum('bcl,oc->bol', hp[:, :, k:k + Lh], w[:, :, k])
        return out + b[None, :, None]

    h1 = jax.nn.relu(conv1d(x, w1, b1))
    h2 = jax.nn.relu(conv1d(h1, w2, b2))
    flat = h2.reshape(h2.shape[0], -1)         # channel-major flatten (c*L + l)
    return flat @ fcw.T + fcb


if __name__ == "__main__":
    B, L, E = 2, 16, 64                        # batch, input_dim, embedding_dim
    key = jax.random.PRNGKey(0)
    ks = jax.random.split(key, 8)

    x = jax.random.normal(ks[0], (B, 1, L), dtype=jnp.float32)
    w1 = jax.random.normal(ks[1], (32, 1, 3), dtype=jnp.float32) * 0.1
    b1 = jax.random.normal(ks[2], (32,), dtype=jnp.float32) * 0.1
    w2 = jax.random.normal(ks[3], (64, 32, 3), dtype=jnp.float32) * 0.1
    b2 = jax.random.normal(ks[4], (64,), dtype=jnp.float32) * 0.1
    fcw = jax.random.normal(ks[5], (E, L * 64), dtype=jnp.float32) * 0.05
    fcb = jax.random.normal(ks[6], (E,), dtype=jnp.float32) * 0.05

    # one-time, load-time packing (single L-chunk: LT = 16)
    params = pack_params(w1, b1, w2, b2, fcw, fcb)
    out = jax.block_until_ready(eeg_embedding_forward(x, params))
    assert out.shape == (B, E)
    ref = reference_forward(x, w1, b1, w2, b2, fcw, fcb)
    np.testing.assert_allclose(np.asarray(out), np.asarray(ref),
                               rtol=2e-3, atol=2e-3)

    # multi-tile grid check: 2 batch tiles x 2 L-chunks (accumulator path)
    params_lt8 = pack_params(w1, b1, w2, b2, fcw, fcb, l_tile=8)
    x2 = jax.random.normal(ks[7], (10, 1, L), dtype=jnp.float32)
    out2 = jax.block_until_ready(
        eeg_embedding_forward(x2, params_lt8, batch_tile=8))
    ref2 = reference_forward(x2, w1, b1, w2, b2, fcw, fcb)
    np.testing.assert_allclose(np.asarray(out2), np.asarray(ref2),
                               rtol=2e-3, atol=2e-3)

    print("KERNEL_OK")
</pallas_src>

<mosaic_0001>
module attributes {stable_mosaic.version = 11 : i64} {
  func.func @_eeg_kernel(%arg0: i32, %arg1: i32, %arg2: memref<8x20xf32, #tpu.memory_space<vmem>>, %arg3: memref<3x32xf32, #tpu.memory_space<vmem>>, %arg4: memref<1x32xf32, #tpu.memory_space<vmem>>, %arg5: memref<3x32x64xf32, #tpu.memory_space<vmem>>, %arg6: memref<1x64xf32, #tpu.memory_space<vmem>>, %arg7: memref<16x64x128xf32, #tpu.memory_space<vmem>>, %arg8: memref<1x128xf32, #tpu.memory_space<vmem>>, %arg9: memref<8x128xf32, #tpu.memory_space<vmem>>, %arg10: memref<20x8xf32, #tpu.memory_space<vmem>>, %arg11: memref<8x128xf32, #tpu.memory_space<vmem>>) attributes {dimension_semantics = [#tpu.dimension_semantics<parallel>, #tpu.dimension_semantics<arbitrary>], iteration_bounds = array<i64: 1, 1>, scalar_prefetch = 0 : i64, scratch_operands = 2 : i64, tpu.core_type = #tpu.core_type<tc>, window_params = [{transform_indices = @transform_0, window_bounds = array<i64: 8, 20>}, {pipeline_mode = #tpu.pipeline_mode<synchronous>, transform_indices = @transform_1, window_bounds = array<i64: 3, 32>}, {pipeline_mode = #tpu.pipeline_mode<synchronous>, transform_indices = @transform_2, window_bounds = array<i64: 1, 32>}, {pipeline_mode = #tpu.pipeline_mode<synchronous>, transform_indices = @transform_3, window_bounds = array<i64: 3, 32, 64>}, {pipeline_mode = #tpu.pipeline_mode<synchronous>, transform_indices = @transform_4, window_bounds = array<i64: 1, 64>}, {transform_indices = @transform_5, window_bounds = array<i64: 16, 64, 128>}, {pipeline_mode = #tpu.pipeline_mode<synchronous>, transform_indices = @transform_6, window_bounds = array<i64: 1, 128>}, {transform_indices = @transform_7, window_bounds = array<i64: 8, 128>}]} {
    %c0_i32 = arith.constant 0 : i32
    %0 = arith.cmpi eq, %arg1, %c0_i32 : i32
    %1 = arith.extui %0 : i1 to i32
    %c0_i32_0 = arith.constant 0 : i32
    %2 = arith.cmpi ne, %1, %c0_i32_0 : i32
    scf.if %2 {
      %c0_36 = arith.constant 0 : index
      %c0_37 = arith.constant 0 : index
      %81 = vector.load %arg2[%c0_36, %c0_37] : memref<8x20xf32, #tpu.memory_space<vmem>>, vector<8x20xf32>
      %82 = tpu.transpose %81, [1, 0] : vector<8x20xf32> -> vector<20x8xf32>
      %c0_38 = arith.constant 0 : index
      %c0_39 = arith.constant 0 : index
      %83 = vector.load %arg10[%c0_38, %c0_39] : memref<20x8xf32, #tpu.memory_space<vmem>>, vector<20x8xf32>
      tpu.vector_store %arg10[%c0_38, %c0_39], %82 {strides = array<i32>} : memref<20x8xf32, #tpu.memory_space<vmem>>, vector<20x8xf32>,
      %cst_40 = arith.constant 0.000000e+00 : f32
      %84 = vector.broadcast %cst_40 : f32 to vector<8x128xf32>
      %c0_41 = arith.constant 0 : index
      %c0_42 = arith.constant 0 : index
      %85 = vector.load %arg11[%c0_41, %c0_42] : memref<8x128xf32, #tpu.memory_space<vmem>>, vector<8x128xf32>
      tpu.vector_store %arg11[%c0_41, %c0_42], %84 {strides = array<i32>} : memref<8x128xf32, #tpu.memory_space<vmem>>, vector<8x128xf32>,
    } else {
    }
    %c16_i32 = arith.constant 16 : i32
    %3 = arith.muli %arg1, %c16_i32 : i32
    %4 = tpu.assume_multiple %3, 8 : i32
    %5 = arith.index_cast %4 : i32 to index
    %c0 = arith.constant 0 : index
    %6 = vector.load %arg10[%5, %c0] : memref<20x8xf32, #tpu.memory_space<vmem>>, vector<20x8xf32>
    %7 = vector.shape_cast %6 : vector<20x8xf32> to vector<20x8x1xf32>
    %8 = vector.extract_strided_slice %7 {offsets = [0, 0, 0], sizes = [18, 8, 1], strides = [1, 1, 1]} : vector<20x8x1xf32> to vector<18x8x1xf32>
    %c0_1 = arith.constant 0 : index
    %c0_2 = arith.constant 0 : index
    %9 = vector.load %arg3[%c0_1, %c0_2] : memref<3x32xf32, #tpu.memory_space<vmem>>, vector<1x32xf32>
    %10 = vector.shape_cast %9 : vector<1x32xf32> to vector<1x1x32xf32>
    %11 = vector.broadcast %8 : vector<18x8x1xf32> to vector<18x8x32xf32>
    %12 = vector.broadcast %10 : vector<1x1x32xf32> to vector<18x8x32xf32>
    %13 = arith.mulf %11, %12 : vector<18x8x32xf32>
    %14 = vector.extract_strided_slice %7 {offsets = [1, 0, 0], sizes = [18, 8, 1], strides = [1, 1, 1]} : vector<20x8x1xf32> to vector<18x8x1xf32>
    %c1 = arith.constant 1 : index
    %c0_3 = arith.constant 0 : index
    %15 = vector.load %arg3[%c1, %c0_3] : memref<3x32xf32, #tpu.memory_space<vmem>>, vector<1x32xf32>
    %16 = vector.shape_cast %15 : vector<1x32xf32> to vector<1x1x32xf32>
    %17 = vector.broadcast %14 : vector<18x8x1xf32> to vector<18x8x32xf32>
    %18 = vector.broadcast %16 : vector<1x1x32xf32> to vector<18x8x32xf32>
    %19 = arith.mulf %17, %18 : vector<18x8x32xf32>
    %20 = arith.addf %13, %19 : vector<18x8x32xf32>
    %21 = vector.extract_strided_slice %7 {offsets = [2, 0, 0], sizes = [18, 8, 1], strides = [1, 1, 1]} : vector<20x8x1xf32> to vector<18x8x1xf32>
    %c2 = arith.constant 2 : index
    %c0_4 = arith.constant 0 : index
    %22 = vector.load %arg3[%c2, %c0_4] : memref<3x32xf32, #tpu.memory_space<vmem>>, vector<1x32xf32>
    %23 = vector.shape_cast %22 : vector<1x32xf32> to vector<1x1x32xf32>
    %24 = vector.broadcast %21 : vector<18x8x1xf32> to vector<18x8x32xf32>
    %25 = vector.broadcast %23 : vector<1x1x32xf32> to vector<18x8x32xf32>
    %26 = arith.mulf %24, %25 : vector<18x8x32xf32>
    %27 = arith.addf %20, %26 : vector<18x8x32xf32>
    %c0_5 = arith.constant 0 : index
    %c0_6 = arith.constant 0 : index
    %28 = vector.load %arg4[%c0_5, %c0_6] : memref<1x32xf32, #tpu.memory_space<vmem>>, vector<1x32xf32>
    %29 = vector.shape_cast %28 : vector<1x32xf32> to vector<1x1x32xf32>
    %30 = vector.broadcast %29 : vector<1x1x32xf32> to vector<18x8x32xf32>
    %31 = arith.addf %27, %30 : vector<18x8x32xf32>
    %cst = arith.constant 0.000000e+00 : f32
    %32 = vector.broadcast %cst : f32 to vector<18x8x32xf32>
    %33 = arith.maximumf %31, %32 : vector<18x8x32xf32>
    %c16_i32_7 = arith.constant 16 : i32
    %34 = arith.muli %arg1, %c16_i32_7 : i32
    %c1_i32 = arith.constant 1 : i32
    %35 = arith.subi %34, %c1_i32 : i32
    %36 = tpu.iota {dimensions = array<i32: 0>} : vector<18x32xi32>
    %37 = vector.broadcast %35 : i32 to vector<18x32xi32>
    %38 = arith.addi %37, %36 : vector<18x32xi32>
    %c0_i32_8 = arith.constant 0 : i32
    %39 = vector.broadcast %c0_i32_8 : i32 to vector<18x32xi32>
    %40 = arith.cmpi sge, %38, %39 : vector<18x32xi32>
    %c16_i32_9 = arith.constant 16 : i32
    %41 = vector.broadcast %c16_i32_9 : i32 to vector<18x32xi32>
    %42 = arith.cmpi slt, %38, %41 : vector<18x32xi32>
    %43 = arith.andi %40, %42 : vector<18x32xi1>
    %44 = arith.extui %43 : vector<18x32xi1> to vector<18x32xi32>
    %45 = arith.sitofp %44 : vector<18x32xi32> to vector<18x32xf32>
    %46 = vector.shape_cast %45 : vector<18x32xf32> to vector<18x1x32xf32>
    %47 = vector.broadcast %46 : vector<18x1x32xf32> to vector<18x8x32xf32>
    %48 = arith.mulf %33, %47 : vector<18x8x32xf32>
    %49 = vector.extract_strided_slice %48 {offsets = [0, 0, 0], sizes = [16, 8, 32], strides = [1, 1, 1]} : vector<18x8x32xf32> to vector<16x8x32xf32>
    %50 = vector.shape_cast %49 : vector<16x8x32xf32> to vector<128x32xf32>
    %c0_10 = arith.constant 0 : index
    %c0_11 = arith.constant 0 : index
    %c0_12 = arith.constant 0 : index
    %51 = vector.load %arg5[%c0_10, %c0_11, %c0_12] : memref<3x32x64xf32, #tpu.memory_space<vmem>>, vector<1x32x64xf32>
    %52 = vector.shape_cast %51 : vector<1x32x64xf32> to vector<32x64xf32>
    %cst_13 = arith.constant dense<0.000000e+00> : vector<128x64xf32>
    %53 = tpu.matmul %50, %52, %cst_13 {dimension_numbers = #tpu.dot_dimension_numbers<[1], [0], [0], [1], [0, 0, 1, 1], [], []>} : vector<128x32xf32>, vector<32x64xf32>, vector<128x64xf32> -> vector<128x64xf32>
    %54 = vector.extract_strided_slice %48 {offsets = [1, 0, 0], sizes = [16, 8, 32], strides = [1, 1, 1]} : vector<18x8x32xf32> to vector<16x8x32xf32>
    %55 = vector.shape_cast %54 : vector<16x8x32xf32> to vector<128x32xf32>
    %c1_14 = arith.constant 1 : index
    %c0_15 = arith.constant 0 : index
    %c0_16 = arith.constant 0 : index
    %56 = vector.load %arg5[%c1_14, %c0_15, %c0_16] : memref<3x32x64xf32, #tpu.memory_space<vmem>>, vector<1x32x64xf32>
    %57 = vector.shape_cast %56 : vector<1x32x64xf32> to vector<32x64xf32>
    %cst_17 = arith.constant dense<0.000000e+00> : vector<128x64xf32>
    %58 = tpu.matmul %55, %57, %cst_17 {dimension_numbers = #tpu.dot_dimension_numbers<[1], [0], [0], [1], [0, 0, 1, 1], [], []>} : vector<128x32xf32>, vector<32x64xf32>, vector<128x64xf32> -> vector<128x64xf32>
    %59 = arith.addf %53, %58 : vector<128x64xf32>
    %60 = vector.extract_strided_slice %48 {offsets = [2, 0, 0], sizes = [16, 8, 32], strides = [1, 1, 1]} : vector<18x8x32xf32> to vector<16x8x32xf32>
    %61 = vector.shape_cast %60 : vector<16x8x32xf32> to vector<128x32xf32>
    %c2_18 = arith.constant 2 : index
    %c0_19 = arith.constant 0 : index
    %c0_20 = arith.constant 0 : index
    %62 = vector.load %arg5[%c2_18, %c0_19, %c0_20] : memref<3x32x64xf32, #tpu.memory_space<vmem>>, vector<1x32x64xf32>
    %63 = vector.shape_cast %62 : vector<1x32x64xf32> to vector<32x64xf32>
    %cst_21 = arith.constant dense<0.000000e+00> : vector<128x64xf32>
    %64 = tpu.matmul %61, %63, %cst_21 {dimension_numbers = #tpu.dot_dimension_numbers<[1], [0], [0], [1], [0, 0, 1, 1], [], []>} : vector<128x32xf32>, vector<32x64xf32>, vector<128x64xf32> -> vector<128x64xf32>
    %65 = arith.addf %59, %64 : vector<128x64xf32>
    %c0_22 = arith.constant 0 : index
    %c0_23 = arith.constant 0 : index
    %66 = vector.load %arg6[%c0_22, %c0_23] : memref<1x64xf32, #tpu.memory_space<vmem>>, vector<1x64xf32>
    %67 = vector.broadcast %66 : vector<1x64xf32> to vector<128x64xf32>
    %68 = arith.addf %65, %67 : vector<128x64xf32>
    %cst_24 = arith.constant 0.000000e+00 : f32
    %69 = vector.broadcast %cst_24 : f32 to vector<128x64xf32>
    %70 = arith.maximumf %68, %69 : vector<128x64xf32>
    %71 = vector.shape_cast %70 : vector<128x64xf32> to vector<16x8x64xf32>
    %c0_25 = arith.constant 0 : index
    %c0_26 = arith.constant 0 : index
    %c0_27 = arith.constant 0 : index
    %72 = vector.load %arg7[%c0_25, %c0_26, %c0_27] : memref<16x64x128xf32, #tpu.memory_space<vmem>>, vector<16x64x128xf32>
    "tpu.trace_start"() <{level = 10 : i32, message = "lbc,lce->lbe"}> : () -> ()
    %cst_28 = arith.constant dense<0.000000e+00> : vector<16x8x128xf32>
    %73 = tpu.matmul %71, %72, %cst_28 {dimension_numbers = #tpu.dot_dimension_numbers<[2], [1], [1], [2], [0, 0, 0, 1, 1, 2], [0], [0]>} : vector<16x8x64xf32>, vector<16x64x128xf32>, vector<16x8x128xf32> -> vector<16x8x128xf32>
    "tpu.trace_stop"() : () -> ()
    %c0_29 = arith.constant 0 : index
    %c0_30 = arith.constant 0 : index
    %74 = vector.load %arg11[%c0_29, %c0_30] : memref<8x128xf32, #tpu.memory_space<vmem>>, vector<8x128xf32>
    %cst_31 = arith.constant dense<0.000000e+00> : vector<8x128xf32>
    %75 = vector.multi_reduction <add>, %73, %cst_31 [0] : vector<16x8x128xf32> to vector<8x128xf32>
    %76 = arith.addf %74, %75 : vector<8x128xf32>
    %c0_32 = arith.constant 0 : index
    %c0_33 = arith.constant 0 : index
    %77 = vector.load %arg11[%c0_32, %c0_33] : memref<8x128xf32, #tpu.memory_space<vmem>>, vector<8x128xf32>
    tpu.vector_store %arg11[%c0_32, %c0_33], %76 {strides = array<i32>} : memref<8x128xf32, #tpu.memory_space<vmem>>, vector<8x128xf32>,
    %c0_i32_34 = arith.constant 0 : i32
    %78 = arith.cmpi eq, %arg1, %c0_i32_34 : i32
    %79 = arith.extui %78 : i1 to i32
    %c0_i32_35 = arith.constant 0 : i32
    %80 = arith.cmpi ne, %79, %c0_i32_35 : i32
    scf.if %80 {
      %c0_36 = arith.constant 0 : index
      %c0_37 = arith.constant 0 : index
      %81 = vector.load %arg11[%c0_36, %c0_37] : memref<8x128xf32, #tpu.memory_space<vmem>>, vector<8x128xf32>
      %c0_38 = arith.constant 0 : index
      %c0_39 = arith.constant 0 : index
      %82 = vector.load %arg8[%c0_38, %c0_39] : memref<1x128xf32, #tpu.memory_space<vmem>>, vector<1x128xf32>
      %83 = vector.broadcast %82 : vector<1x128xf32> to vector<8x128xf32>
      %84 = arith.addf %81, %83 : vector<8x128xf32>
      %c0_40 = arith.constant 0 : index
      %c0_41 = arith.constant 0 : index
      %85 = vector.load %arg9[%c0_40, %c0_41] : memref<8x128xf32, #tpu.memory_space<vmem>>, vector<8x128xf32>
      tpu.vector_store %arg9[%c0_40, %c0_41], %84 {strides = array<i32>} : memref<8x128xf32, #tpu.memory_space<vmem>>, vector<8x128xf32>,
    } else {
    }
    return
  }
  func.func @transform_0(%arg0: i32, %arg1: i32) -> (i32, i32) {
    %c0_i32 = arith.constant 0 : i32
    %c0_i32_0 = arith.constant 0 : i32
    return %arg0, %c0_i32 : i32, i32
  }
  func.func @transform_1(%arg0: i32, %arg1: i32) -> (i32, i32) {
    %c0_i32 = arith.constant 0 : i32
    %c0_i32_0 = arith.constant 0 : i32
    %c0_i32_1 = arith.constant 0 : i32
    return %c0_i32, %c0_i32_0 : i32, i32
  }
  func.func @transform_2(%arg0: i32, %arg1: i32) -> (i32, i32) {
    %c0_i32 = arith.constant 0 : i32
    %c0_i32_0 = arith.constant 0 : i32
    %c0_i32_1 = arith.constant 0 : i32
    return %c0_i32, %c0_i32_0 : i32, i32
  }
  func.func @transform_3(%arg0: i32, %arg1: i32) -> (i32, i32, i32) {
    %c0_i32 = arith.constant 0 : i32
    %c0_i32_0 = arith.constant 0 : i32
    %c0_i32_1 = arith.constant 0 : i32
    %c0_i32_2 = arith.constant 0 : i32
    return %c0_i32, %c0_i32_0, %c0_i32_1 : i32, i32, i32
  }
  func.func @transform_4(%arg0: i32, %arg1: i32) -> (i32, i32) {
    %c0_i32 = arith.constant 0 : i32
    %c0_i32_0 = arith.constant 0 : i32
    %c0_i32_1 = arith.constant 0 : i32
    return %c0_i32, %c0_i32_0 : i32, i32
  }
  func.func @transform_5(%arg0: i32, %arg1: i32) -> (i32, i32, i32) {
    %c0_i32 = arith.constant 0 : i32
    %c0_i32_0 = arith.constant 0 : i32
    %c0_i32_1 = arith.constant 0 : i32
    return %arg1, %c0_i32, %c0_i32_0 : i32, i32, i32
  }
  func.func @transform_6(%arg0: i32, %arg1: i32) -> (i32, i32) {
    %c0_i32 = arith.constant 0 : i32
    %c0_i32_0 = arith.constant 0 : i32
    %c0_i32_1 = arith.constant 0 : i32
    return %c0_i32, %c0_i32_0 : i32, i32
  }
  func.func @transform_7(%arg0: i32, %arg1: i32) -> (i32, i32) {
    %c0_i32 = arith.constant 0 : i32
    %c0_i32_0 = arith.constant 0 : i32
    return %arg0, %c0_i32 : i32, i32
  }
}

</mosaic_0001>

<llo_original>
// kernel: tpu_custom_call.1
$region0: #{tpu_custom_call.1}
  #allocation0 [shape = 'u32[]', space=smem, size = 0x4, offset = 0x4, fixed_abs, tag = 'smem constant byte address 0x4 - core index']
  #allocation1 [shape = 'u32[144,128]{1,0:T(1,128)}', space=vmem, size = 0x12000, scoped, tag = 'internal scratch']
  #allocation2 [shape = 'f32[20,8]{1,0:T(8,128)}', space=vmem, size = 0x3000, scoped, tag = 'scratch operand']
  #allocation3 [shape = 'f32[8,128]{1,0:T(8,128)}', space=vmem, size = 0x1000, scoped, tag = 'scratch operand']
  %s0 = inlined_call_operand.hbm [shape: f32[8,20], index: 0, kind: input, shape index: {}]
  %s1 = inlined_call_operand.hbm [shape: f32[3,32], index: 1, kind: input, shape index: {}]
  %s2 = inlined_call_operand.hbm [shape: f32[1,32], index: 2, kind: input, shape index: {}]
  %s3 = inlined_call_operand.hbm [shape: f32[3,32,64], index: 3, kind: input, shape index: {}]
  %s4 = inlined_call_operand.hbm [shape: f32[1,64], index: 4, kind: input, shape index: {}]
  %s5 = inlined_call_operand.hbm [shape: f32[16,64,128], index: 5, kind: input, shape index: {}]
  %s6 = inlined_call_operand.hbm [shape: f32[1,128], index: 6, kind: input, shape index: {}]
  %s7 = inlined_call_operand.hbm [shape: f32[8,128], index: 7, kind: output, shape index: {}]
  %s8 = sld [smem:[#allocation0]]
  $region74: #{tpu_custom_call.1} parent=0
    _
  %s10 = ssub.s32 1, %s8
  %s11 = scalar_select 0, %s10, %s8
  $region1: #{tpu_custom_call.1} parent=0
    #allocation4 [shape = 'u8[4096]{0}', space=vmem, size = 0x1000, scoped, tag = 'input window, operand 0, single buffered']
    #allocation5 [shape = 's32[1]{0}', space=sflag, size = 0x4, scoped, tag = 'scoped memory for tpu_custom_call.1']
    #allocation6 [shape = 's32[1]{0}', space=sflag, size = 0x4, scoped, tag = 'scoped memory for tpu_custom_call.1']
    #allocation7 [shape = 'u8[2048]{0}', space=vmem, size = 0x800, scoped, tag = 'input window, operand 1, single buffered']
    #allocation8 [shape = 's32[1]{0}', space=sflag, size = 0x4, scoped, tag = 'scoped memory for tpu_custom_call.1']
    #allocation9 [shape = 'u8[512]{0}', space=vmem, size = 0x400, scoped, tag = 'input window, operand 2, single buffered']
    #allocation10 [shape = 'u8[49152]{0}', space=vmem, size = 0xc000, scoped, tag = 'input window, operand 3, single buffered']
    #allocation11 [shape = 's32[1]{0}', space=sflag, size = 0x4, scoped, tag = 'scoped memory for tpu_custom_call.1']
    #allocation12 [shape = 'u8[512]{0}', space=vmem, size = 0x400, scoped, tag = 'input window, operand 4, single buffered']
    #allocation13 [shape = 'u8[524288]{0}', space=vmem, size = 0x80000, scoped, tag = 'input window, operand 5, single buffered']
    #allocation14 [shape = 's32[1]{0}', space=sflag, size = 0x4, scoped, tag = 'scoped memory for tpu_custom_call.1']
    #allocation15 [shape = 'u8[512]{0}', space=vmem, size = 0x400, scoped, tag = 'input window, operand 6, single buffered']
    #allocation16 [shape = 'u8[4096]{0}', space=vmem, size = 0x1000, scoped, tag = 'output window, operand 0, single buffered']
    %12 = vsyncpa [#allocation5], 0
    %13 = vsyncpa [#allocation8], 0
    %14 = vsyncpa [#allocation11], 0
    %15 = vsyncpa [#allocation14], 0
    %16 = vsyncpa [#allocation6], 0
    // Predicated region
    $region2: #{tpu_custom_call.1} parent=1 // pred_check
      _
    $region3: #{tpu_custom_call.1} parent=1 // pred_check_branch
      %18 = sbr.rel (0) target = $region5
    $region4: #{tpu_custom_call.1} parent=1 // pred_region
      %s20 = ssub.s32 128, 128
      %21 = vsyncadd [#allocation5], %s20
      %s23 = sshll.u32 [#allocation4], 4
      %s24 = int_to_ptr.vmem [resolvable:$true] %s23
      %26 = dma.hbm_to_vmem [thread:$0]  %s0, 128, %s24, [#allocation5]
    $region5: #{tpu_custom_call.1} parent=1 // pred_fallthru
      _
    // Predicated region
    $region6: #{tpu_custom_call.1} parent=1 // pred_check
      _
    $region7: #{tpu_custom_call.1} parent=1 // pred_check_branch
      %28 = sbr.rel (0) target = $region9
    $region8: #{tpu_custom_call.1} parent=1 // pred_region
      %s30 = ssub.s32 64, 64
      %31 = vsyncadd [#allocation8], %s30
      %s33 = sshll.u32 [#allocation7], 4
      %s34 = int_to_ptr.vmem [resolvable:$true] %s33
      %36 = dma.hbm_to_vmem [thread:$0]  %s1, 64, %s34, [#allocation8]
    $region9: #{tpu_custom_call.1} parent=1 // pred_fallthru
      _
    // Predicated region
    $region10: #{tpu_custom_call.1} parent=1 // pred_check
      _
    $region11: #{tpu_custom_call.1} parent=1 // pred_check_branch
      %38 = sbr.rel (0) target = $region13
    $region12: #{tpu_custom_call.1} parent=1 // pred_region
      %s40 = ssub.s32 16, 16
      %41 = vsyncadd [#allocation8], %s40
      %s43 = sshll.u32 [#allocation9], 4
      %s44 = int_to_ptr.vmem [resolvable:$true] %s43
      %46 = dma.hbm_to_vmem [thread:$0]  %s2, 16, %s44, [#allocation8]
    $region13: #{tpu_custom_call.1} parent=1 // pred_fallthru
      _
    // Predicated region
    $region14: #{tpu_custom_call.1} parent=1 // pred_check
      _
    $region15: #{tpu_custom_call.1} parent=1 // pred_check_branch
      %48 = sbr.rel (0) target = $region17
    $region16: #{tpu_custom_call.1} parent=1 // pred_region
      %s50 = ssub.s32 1536, 1536
      %51 = vsyncadd [#allocation11], %s50
      %s52 = sshll.u32 [#allocation10], 4
      %s53 = int_to_ptr.vmem [resolvable:$true] %s52
      %58 = dma.hbm_to_vmem [thread:$0]  %s3, 1536, %s53, [#allocation11], 128, 128, 8
    $region17: #{tpu_custom_call.1} parent=1 // pred_fallthru
      _
    // Predicated region
    $region18: #{tpu_custom_call.1} parent=1 // pred_check
      _
    $region19: #{tpu_custom_call.1} parent=1 // pred_check_branch
      %60 = sbr.rel (0) target = $region21
    $region20: #{tpu_custom_call.1} parent=1 // pred_region
      %s62 = ssub.s32 16, 16
      %63 = vsyncadd [#allocation11], %s62
      %s65 = sshll.u32 [#allocation12], 4
      %s66 = int_to_ptr.vmem [resolvable:$true] %s65
      %68 = dma.hbm_to_vmem [thread:$0]  %s4, 16, %s66, [#allocation11]
    $region21: #{tpu_custom_call.1} parent=1 // pred_fallthru
      _
    // Predicated region
    $region22: #{tpu_custom_call.1} parent=1 // pred_check
      _
    $region23: #{tpu_custom_call.1} parent=1 // pred_check_branch
      %70 = sbr.rel (0) target = $region25
    $region24: #{tpu_custom_call.1} parent=1 // pred_region
      %s72 = ssub.s32 16384, 16384
      %73 = vsyncadd [#allocation14], %s72
      %s74 = sshll.u32 [#allocation13], 4
      %s75 = int_to_ptr.vmem [resolvable:$true] %s74
      %80 = dma.hbm_to_vmem [thread:$0]  %s5, 16384, %s75, [#allocation14], 128, 128, 8
    $region25: #{tpu_custom_call.1} parent=1 // pred_fallthru
      _
    // Predicated region
    $region26: #{tpu_custom_call.1} parent=1 // pred_check
      _
    $region27: #{tpu_custom_call.1} parent=1 // pred_check_branch
      %82 = sbr.rel (0) target = $region29
    $region28: #{tpu_custom_call.1} parent=1 // pred_region
      %s84 = ssub.s32 16, 16
      %85 = vsyncadd [#allocation14], %s84
      %s87 = sshll.u32 [#allocation15], 4
      %s88 = int_to_ptr.vmem [resolvable:$true] %s87
      %90 = dma.hbm_to_vmem [thread:$0]  %s6, 16, %s88, [#allocation14]
    $region29: #{tpu_custom_call.1} parent=1 // pred_fallthru
      _
    // Predicated region
    $region30: #{tpu_custom_call.1} parent=1 // pred_check
      _
    $region31: #{tpu_custom_call.1} parent=1 // pred_check_branch
      %92 = sbr.rel (0) target = $region33
    $region32: #{tpu_custom_call.1} parent=1 // pred_region
      %93 = dma.done [#allocation5], 128
    $region33: #{tpu_custom_call.1} parent=1 // pred_fallthru
      _
    // Predicated region
    $region34: #{tpu_custom_call.1} parent=1 // pred_check
      _
    $region35: #{tpu_custom_call.1} parent=1 // pred_check_branch
      %95 = sbr.rel (0) target = $region37
    $region36: #{tpu_custom_call.1} parent=1 // pred_region
      %96 = dma.done [#allocation8], 64
    $region37: #{tpu_custom_call.1} parent=1 // pred_fallthru
      _
    // Predicated region
    $region38: #{tpu_custom_call.1} parent=1 // pred_check
      _
    $region39: #{tpu_custom_call.1} parent=1 // pred_check_branch
      %98 = sbr.rel (0) target = $region41
    $region40: #{tpu_custom_call.1} parent=1 // pred_region
      %99 = dma.done [#allocation8], 16
    $region41: #{tpu_custom_call.1} parent=1 // pred_fallthru
      _
    // Predicated region
    $region42: #{tpu_custom_call.1} parent=1 // pred_check
      _
    $region43: #{tpu_custom_call.1} parent=1 // pred_check_branch
      %101 = sbr.rel (0) target = $region45
    $region44: #{tpu_custom_call.1} parent=1 // pred_region
      %102 = dma.done [#allocation11], 1536
    $region45: #{tpu_custom_call.1} parent=1 // pred_fallthru
      _
    // Predicated region
    $region46: #{tpu_custom_call.1} parent=1 // pred_check
      _
    $region47: #{tpu_custom_call.1} parent=1 // pred_check_branch
      %104 = sbr.rel (0) target = $region49
    $region48: #{tpu_custom_call.1} parent=1 // pred_region
      %105 = dma.done [#allocation11], 16
    $region49: #{tpu_custom_call.1} parent=1 // pred_fallthru
      _
    // Predicated region
    $region50: #{tpu_custom_call.1} parent=1 // pred_check
      _
    $region51: #{tpu_custom_call.1} parent=1 // pred_check_branch
      %107 = sbr.rel (0) target = $region53
    $region52: #{tpu_custom_call.1} parent=1 // pred_region
      %108 = dma.done [#allocation14], 16384
    $region53: #{tpu_custom_call.1} parent=1 // pred_fallthru
      _
    // Predicated region
    $region54: #{tpu_custom_call.1} parent=1 // pred_check
      _
    $region55: #{tpu_custom_call.1} parent=1 // pred_check_branch
      %110 = sbr.rel (0) target = $region57
    $region56: #{tpu_custom_call.1} parent=1 // pred_region
      %111 = dma.done [#allocation14], 16
    $region57: #{tpu_custom_call.1} parent=1 // pred_fallthru
      _
    %p112 = scmp.eq.s32.totalorder 0, 0
    // Predicated region
    $region58: #{tpu_custom_call.1} parent=1 // pred_check
      %p113 = pneg %p112
    $region59: #{tpu_custom_call.1} parent=1 // pred_check_branch
      %115 = sbr.rel (%p113) target = $region61
    $region60: #{tpu_custom_call.1} parent=1 // pred_region
      %v116 = vld [vmem:[#allocation4] sm:$0xff]
      %117 = vxpose.xlu0.b32.start [1/16] %v116, 128
      %118 = vxpose.xlu0.b32.cont [2/16] 0.0, 128
      %119 = vxpose.xlu0.b32.cont [3/16] 0.0, 128
      %120 = vxpose.xlu0.b32.cont [4/16] 0.0, 128
      %121 = vxpose.xlu0.b32.cont [5/16] 0.0, 128
      %122 = vxpose.xlu0.b32.cont [6/16] 0.0, 128
      %123 = vxpose.xlu0.b32.cont [7/16] 0.0, 128
      %124 = vxpose.xlu0.b32.cont [8/16] 0.0, 128
      %125 = vxpose.xlu0.b32.cont [9/16] 0.0, 128
      %126 = vxpose.xlu0.b32.cont [10/16] 0.0, 128
      %127 = vxpose.xlu0.b32.cont [11/16] 0.0, 128
      %128 = vxpose.xlu0.b32.cont [12/16] 0.0, 128
      %129 = vxpose.xlu0.b32.cont [13/16] 0.0, 128
      %130 = vxpose.xlu0.b32.cont [14/16] 0.0, 128
      %131 = vxpose.xlu0.b32.cont [15/16] 0.0, 128
      %132 = vxpose.xlu0.b32.end [16/16] 0.0, 128
      %v133 = vpop.trf.xlu0
      %v134 = vpop.trf.xlu0
      %v135 = vpop.trf.xlu0
      %v136 = vpop.trf.xlu0
      %v137 = vpop.trf.xlu0
      %v138 = vpop.trf.xlu0
      %v139 = vpop.trf.xlu0
      %v140 = vpop.trf.xlu0
      %v141 = vpop.trf.xlu0
      %v142 = vpop.trf.xlu0
      %v143 = vpop.trf.xlu0
      %v144 = vpop.trf.xlu0
      %v145 = vpop.trf.xlu0
      %v146 = vpop.trf.xlu0
      %v147 = vpop.trf.xlu0
      %v148 = vpop.trf.xlu0
      %vm149 = vcmask 64512
      %150 = vst.msk [vmem:[#allocation2] sm:$0xff] %vm149, %v133
      %151 = vst.msk [vmem:[#allocation2 + $0x8] sm:$0xff] %vm149, %v134
      %vm152 = vcmask 60416
      %153 = vst.msk [vmem:[#allocation2 + $0x10] sm:$0xf] %vm152, %v135
      %154 = vst [vmem:[#allocation3] sm:$0xff] 0.0
    $region61: #{tpu_custom_call.1} parent=1 // pred_fallthru
      _
    %s155 = smul.u32 0, 16
    %s156 = scalar_lea.vmem [#allocation2], %s155
    %v157 = vld [vmem:[%s156] sm:$0xff]
    %v158 = vld [vmem:[%s156 + $0x8] sm:$0xff]
    %v159 = vld [vmem:[%s156 + $0x10] sm:$0xf]
    %v160 = vlaneseq
    %v161 = vshrl.u32 %v160, 7
    %v162 = vsub.s32 0, %v161
    %v163 = vrot.slane %v157, %v162
    %165 = vbcast.lane.b32.xlu0 %v163, 256
    %v166 = vpop.permute.xlu0 %165
    %v167 = vlaneseq
    %v168 = vshrl.u32 %v167, 7
    %v169 = vsub.s32 1, %v168
    %v170 = vrot.slane %v157, %v169
    %172 = vbcast.lane.b32.xlu0 %v170, 256
    %v173 = vpop.permute.xlu0 %172
    %v174 = vlaneseq
    %v175 = vshrl.u32 %v174, 7
    %v176 = vsub.s32 2, %v175
    %v177 = vrot.slane %v157, %v176
    %179 = vbcast.lane.b32.xlu0 %v177, 256
    %v180 = vpop.permute.xlu0 %179
    %v181 = vlaneseq
    %v182 = vshrl.u32 %v181, 7
    %v183 = vsub.s32 3, %v182
    %v184 = vrot.slane %v157, %v183
    %186 = vbcast.lane.b32.xlu0 %v184, 256
    %v187 = vpop.permute.xlu0 %186
    %v188 = vlaneseq
    %v189 = vshrl.u32 %v188, 7
    %v190 = vsub.s32 4, %v189
    %v191 = vrot.slane %v157, %v190
    %193 = vbcast.lane.b32.xlu0 %v191, 256
    %v194 = vpop.permute.xlu0 %193
    %v195 = vlaneseq
    %v196 = vshrl.u32 %v195, 7
    %v197 = vsub.s32 5, %v196
    %v198 = vrot.slane %v157, %v197
    %200 = vbcast.lane.b32.xlu0 %v198, 256
    %v201 = vpop.permute.xlu0 %200
    %v202 = vlaneseq
    %v203 = vshrl.u32 %v202, 7
    %v204 = vsub.s32 6, %v203
    %v205 = vrot.slane %v157, %v204
    %207 = vbcast.lane.b32.xlu0 %v205, 256
    %v208 = vpop.permute.xlu0 %207
    %v209 = vlaneseq
    %v210 = vshrl.u32 %v209, 7
    %v211 = vsub.s32 7, %v210
    %v212 = vrot.slane %v157, %v211
    %214 = vbcast.lane.b32.xlu0 %v212, 256
    %v215 = vpop.permute.xlu0 %214
    %v216 = vlaneseq
    %v217 = vshrl.u32 %v216, 7
    %v218 = vsub.s32 0, %v217
    %v219 = vrot.slane %v158, %v218
    %221 = vbcast.lane.b32.xlu0 %v219, 256
    %v222 = vpop.permute.xlu0 %221
    %v223 = vlaneseq
    %v224 = vshrl.u32 %v223, 7
    %v225 = vsub.s32 1, %v224
    %v226 = vrot.slane %v158, %v225
    %228 = vbcast.lane.b32.xlu0 %v226, 256
    %v229 = vpop.permute.xlu0 %228
    %v230 = vlaneseq
    %v231 = vshrl.u32 %v230, 7
    %v232 = vsub.s32 2, %v231
    %v233 = vrot.slane %v158, %v232
    %235 = vbcast.lane.b32.xlu0 %v233, 256
    %v236 = vpop.permute.xlu0 %235
    %v237 = vlaneseq
    %v238 = vshrl.u32 %v237, 7
    %v239 = vsub.s32 3, %v238
    %v240 = vrot.slane %v158, %v239
    %242 = vbcast.lane.b32.xlu0 %v240, 256
    %v243 = vpop.permute.xlu0 %242
    %v244 = vlaneseq
    %v245 = vshrl.u32 %v244, 7
    %v246 = vsub.s32 4, %v245
    %v247 = vrot.slane %v158, %v246
    %249 = vbcast.lane.b32.xlu0 %v247, 256
    %v250 = vpop.permute.xlu0 %249
    %v251 = vlaneseq
    %v252 = vshrl.u32 %v251, 7
    %v253 = vsub.s32 5, %v252
    %v254 = vrot.slane %v158, %v253
    %256 = vbcast.lane.b32.xlu0 %v254, 256
    %v257 = vpop.permute.xlu0 %256
    %v258 = vlaneseq
    %v259 = vshrl.u32 %v258, 7
    %v260 = vsub.s32 6, %v259
    %v261 = vrot.slane %v158, %v260
    %263 = vbcast.lane.b32.xlu0 %v261, 256
    %v264 = vpop.permute.xlu0 %263
    %v265 = vlaneseq
    %v266 = vshrl.u32 %v265, 7
    %v267 = vsub.s32 7, %v266
    %v268 = vrot.slane %v158, %v267
    %270 = vbcast.lane.b32.xlu0 %v268, 256
    %v271 = vpop.permute.xlu0 %270
    %v272 = vlaneseq
    %v273 = vshrl.u32 %v272, 7
    %v274 = vsub.s32 0, %v273
    %v275 = vrot.slane %v159, %v274
    %277 = vbcast.lane.b32.xlu0 %v275, 256
    %v278 = vpop.permute.xlu0 %277
    %v279 = vlaneseq
    %v280 = vshrl.u32 %v279, 7
    %v281 = vsub.s32 1, %v280
    %v282 = vrot.slane %v159, %v281
    %284 = vbcast.lane.b32.xlu0 %v282, 256
    %v285 = vpop.permute.xlu0 %284
    %v286 = vlaneseq
    %v287 = vshrl.u32 %v286, 7
    %v288 = vsub.s32 2, %v287
    %v289 = vrot.slane %v159, %v288
    %291 = vbcast.lane.b32.xlu0 %v289, 256
    %v292 = vpop.permute.xlu0 %291
    %v293 = vlaneseq
    %v294 = vshrl.u32 %v293, 7
    %v295 = vsub.s32 3, %v294
    %v296 = vrot.slane %v159, %v295
    %298 = vbcast.lane.b32.xlu0 %v296, 256
    %v299 = vpop.permute.xlu0 %298
    %v300 = vld [vmem:[#allocation7] sm:$0x1]
    %v301 = vlaneseq
    %v302 = vshrl.u32 %v301, 7
    %v303 = vsub.s32 0, %v302
    %v304 = vrot.slane %v300, %v303
    %v305 = vmul.f32 %v166, %v304
    %v306 = vmul.f32 %v173, %v304
    %v307 = vmul.f32 %v180, %v304
    %v308 = vmul.f32 %v187, %v304
    %v309 = vmul.f32 %v194, %v304
    %v310 = vmul.f32 %v201, %v304
    %v311 = vmul.f32 %v208, %v304
    %v312 = vmul.f32 %v215, %v304
    %v313 = vmul.f32 %v222, %v304
    %v314 = vmul.f32 %v229, %v304
    %v315 = vmul.f32 %v236, %v304
    %v316 = vmul.f32 %v243, %v304
    %v317 = vmul.f32 %v250, %v304
    %v318 = vmul.f32 %v257, %v304
    %v319 = vmul.f32 %v264, %v304
    %v320 = vmul.f32 %v271, %v304
    %v321 = vmul.f32 %v278, %v304
    %v322 = vmul.f32 %v285, %v304
    %v323 = vld [vmem:[#allocation7 + $0x1] sm:$0x1]
    %v324 = vlaneseq
    %v325 = vshrl.u32 %v324, 7
    %v326 = vsub.s32 0, %v325
    %v327 = vrot.slane %v323, %v326
    %v328 = vmul.f32 %v173, %v327
    %v329 = vmul.f32 %v180, %v327
    %v330 = vmul.f32 %v187, %v327
    %v331 = vmul.f32 %v194, %v327
    %v332 = vmul.f32 %v201, %v327
    %v333 = vmul.f32 %v208, %v327
    %v334 = vmul.f32 %v215, %v327
    %v335 = vmul.f32 %v222, %v327
    %v336 = vmul.f32 %v229, %v327
    %v337 = vmul.f32 %v236, %v327
    %v338 = vmul.f32 %v243, %v327
    %v339 = vmul.f32 %v250, %v327
    %v340 = vmul.f32 %v257, %v327
    %v341 = vmul.f32 %v264, %v327
    %v342 = vmul.f32 %v271, %v327
    %v343 = vmul.f32 %v278, %v327
    %v344 = vmul.f32 %v285, %v327
    %v345 = vmul.f32 %v292, %v327
    %v346 = vadd.f32 %v305, %v328
    %v347 = vadd.f32 %v306, %v329
    %v348 = vadd.f32 %v307, %v330
    %v349 = vadd.f32 %v308, %v331
    %v350 = vadd.f32 %v309, %v332
    %v351 = vadd.f32 %v310, %v333
    %v352 = vadd.f32 %v311, %v334
    %v353 = vadd.f32 %v312, %v335
    %v354 = vadd.f32 %v313, %v336
    %v355 = vadd.f32 %v314, %v337
    %v356 = vadd.f32 %v315, %v338
    %v357 = vadd.f32 %v316, %v339
    %v358 = vadd.f32 %v317, %v340
    %v359 = vadd.f32 %v318, %v341
    %v360 = vadd.f32 %v319, %v342
    %v361 = vadd.f32 %v320, %v343
    %v362 = vadd.f32 %v321, %v344
    %v363 = vadd.f32 %v322, %v345
    %v364 = vld [vmem:[#allocation7 + $0x2] sm:$0x1]
    %v365 = vlaneseq
    %v366 = vshrl.u32 %v365, 7
    %v367 = vsub.s32 0, %v366
    %v368 = vrot.slane %v364, %v367
    %v369 = vmul.f32 %v180, %v368
    %v370 = vmul.f32 %v187, %v368
    %v371 = vmul.f32 %v194, %v368
    %v372 = vmul.f32 %v201, %v368
    %v373 = vmul.f32 %v208, %v368
    %v374 = vmul.f32 %v215, %v368
    %v375 = vmul.f32 %v222, %v368
    %v376 = vmul.f32 %v229, %v368
    %v377 = vmul.f32 %v236, %v368
    %v378 = vmul.f32 %v243, %v368
    %v379 = vmul.f32 %v250, %v368
    %v380 = vmul.f32 %v257, %v368
    %v381 = vmul.f32 %v264, %v368
    %v382 = vmul.f32 %v271, %v368
    %v383 = vmul.f32 %v278, %v368
    %v384 = vmul.f32 %v285, %v368
    %v385 = vmul.f32 %v292, %v368
    %v386 = vmul.f32 %v299, %v368
    %v387 = vadd.f32 %v346, %v369
    %v388 = vadd.f32 %v347, %v370
    %v389 = vadd.f32 %v348, %v371
    %v390 = vadd.f32 %v349, %v372
    %v391 = vadd.f32 %v350, %v373
    %v392 = vadd.f32 %v351, %v374
    %v393 = vadd.f32 %v352, %v375
    %v394 = vadd.f32 %v353, %v376
    %v395 = vadd.f32 %v354, %v377
    %v396 = vadd.f32 %v355, %v378
    %v397 = vadd.f32 %v356, %v379
    %v398 = vadd.f32 %v357, %v380
    %v399 = vadd.f32 %v358, %v381
    %v400 = vadd.f32 %v359, %v382
    %v401 = vadd.f32 %v360, %v383
    %v402 = vadd.f32 %v361, %v384
    %v403 = vadd.f32 %v362, %v385
    %v404 = vadd.f32 %v363, %v386
    %v405 = vld [vmem:[#allocation9] sm:$0x1]
    %v407 = vlaneseq
    %v408 = vshrl.u32 %v407, 7
    %v409 = vsub.s32 0, %v408
    %v410 = vrot.slane %v405, %v409
    %v412 = vadd.f32 %v387, %v410
    %v413 = vadd.f32 %v388, %v410
    %v414 = vadd.f32 %v389, %v410
    %v415 = vadd.f32 %v390, %v410
    %v416 = vadd.f32 %v391, %v410
    %v417 = vadd.f32 %v392, %v410
    %v418 = vadd.f32 %v393, %v410
    %v419 = vadd.f32 %v394, %v410
    %v420 = vadd.f32 %v395, %v410
    %v421 = vadd.f32 %v396, %v410
    %v422 = vadd.f32 %v397, %v410
    %v423 = vadd.f32 %v398, %v410
    %v424 = vadd.f32 %v399, %v410
    %v425 = vadd.f32 %v400, %v410
    %v426 = vadd.f32 %v401, %v410
    %v427 = vadd.f32 %v402, %v410
    %v428 = vadd.f32 %v403, %v410
    %v429 = vadd.f32 %v404, %v410
    %v430 = vmax.f32 %v412, 0.0
    %v431 = vmax.f32 %v413, 0.0
    %v432 = vmax.f32 %v414, 0.0
    %v433 = vmax.f32 %v415, 0.0
    %v434 = vmax.f32 %v416, 0.0
    %v435 = vmax.f32 %v417, 0.0
    %v436 = vmax.f32 %v418, 0.0
    %v437 = vmax.f32 %v419, 0.0
    %v438 = vmax.f32 %v420, 0.0
    %v439 = vmax.f32 %v421, 0.0
    %v440 = vmax.f32 %v422, 0.0
    %v441 = vmax.f32 %v423, 0.0
    %v442 = vmax.f32 %v424, 0.0
    %v443 = vmax.f32 %v425, 0.0
    %v444 = vmax.f32 %v426, 0.0
    %v445 = vmax.f32 %v427, 0.0
    %v446 = vmax.f32 %v428, 0.0
    %v447 = vmax.f32 %v429, 0.0
    %s448 = ssub.s32 %s155, 1
    %v449 = vlaneseq
    %v450 = vshrl.u32 %v449, 7
    %v451 = vadd.s32 %v450, 8
    %v452 = vadd.s32 %v450, 16
    %v453 = vstv %s448
    %v454 = vadd.s32 %v453, %v450
    %v455 = vadd.s32 %v453, %v451
    %v456 = vadd.s32 %v453, %v452
    %vm457 = vcmp.ge.s32.totalorder %v454, 0
    %vm458 = vcmp.ge.s32.totalorder %v455, 0
    %vm459 = vcmp.ge.s32.totalorder %v456, 0
    %vm460 = vcmp.lt.s32.totalorder %v454, 16
    %vm461 = vcmp.lt.s32.totalorder %v455, 16
    %vm462 = vcmp.lt.s32.totalorder %v456, 16
    %vm463 = vmand %vm457, %vm460
    %vm464 = vmand %vm458, %vm461
    %vm465 = vmand %vm459, %vm462
    %v466 = vsel %vm463, 1, 0
    %v467 = vsel %vm464, 1, 0
    %v468 = vsel %vm465, 1, 0
    %v469 = vcvt.s32.f32 %v466
    %v470 = vcvt.s32.f32 %v467
    %v471 = vcvt.s32.f32 %v468
    %v475 = vlaneseq
    %v476 = vshrl.u32 %v475, 7
    %v477 = vsub.s32 0, %v476
    %v478 = vrot.slane %v469, %v477
    %v479 = vlaneseq
    %v480 = vshrl.u32 %v479, 7
    %v481 = vsub.s32 1, %v480
    %v482 = vrot.slane %v469, %v481
    %v483 = vlaneseq
    %v484 = vshrl.u32 %v483, 7
    %v485 = vsub.s32 2, %v484
    %v486 = vrot.slane %v469, %v485
    %v487 = vlaneseq
    %v488 = vshrl.u32 %v487, 7
    %v489 = vsub.s32 3, %v488
    %v490 = vrot.slane %v469, %v489
    %v491 = vlaneseq
    %v492 = vshrl.u32 %v491, 7
    %v493 = vsub.s32 4, %v492
    %v494 = vrot.slane %v469, %v493
    %v495 = vlaneseq
    %v496 = vshrl.u32 %v495, 7
    %v497 = vsub.s32 5, %v496
    %v498 = vrot.slane %v469, %v497
    %v499 = vlaneseq
    %v500 = vshrl.u32 %v499, 7
    %v501 = vsub.s32 6, %v500
    %v502 = vrot.slane %v469, %v501
    %v503 = vlaneseq
    %v504 = vshrl.u32 %v503, 7
    %v505 = vsub.s32 7, %v504
    %v506 = vrot.slane %v469, %v505
    %v507 = vlaneseq
    %v508 = vshrl.u32 %v507, 7
    %v509 = vsub.s32 0, %v508
    %v510 = vrot.slane %v470, %v509
    %v511 = vlaneseq
    %v512 = vshrl.u32 %v511, 7
    %v513 = vsub.s32 1, %v512
    %v514 = vrot.slane %v470, %v513
    %v515 = vlaneseq
    %v516 = vshrl.u32 %v515, 7
    %v517 = vsub.s32 2, %v516
    %v518 = vrot.slane %v470, %v517
    %v519 = vlaneseq
    %v520 = vshrl.u32 %v519, 7
    %v521 = vsub.s32 3, %v520
    %v522 = vrot.slane %v470, %v521
    %v523 = vlaneseq
    %v524 = vshrl.u32 %v523, 7
    %v525 = vsub.s32 4, %v524
    %v526 = vrot.slane %v470, %v525
    %v527 = vlaneseq
    %v528 = vshrl.u32 %v527, 7
    %v529 = vsub.s32 5, %v528
    %v530 = vrot.slane %v470, %v529
    %v531 = vlaneseq
    %v532 = vshrl.u32 %v531, 7
    %v533 = vsub.s32 6, %v532
    %v534 = vrot.slane %v470, %v533
    %v535 = vlaneseq
    %v536 = vshrl.u32 %v535, 7
    %v537 = vsub.s32 7, %v536
    %v538 = vrot.slane %v470, %v537
    %v539 = vlaneseq
    %v540 = vshrl.u32 %v539, 7
    %v541 = vsub.s32 0, %v540
    %v542 = vrot.slane %v471, %v541
    %v543 = vlaneseq
    %v544 = vshrl.u32 %v543, 7
    %v545 = vsub.s32 1, %v544
    %v546 = vrot.slane %v471, %v545
    %v565 = vmul.f32 %v430, %v478
    %v566 = vmul.f32 %v431, %v482
    %v567 = vmul.f32 %v432, %v486
    %v568 = vmul.f32 %v433, %v490
    %v569 = vmul.f32 %v434, %v494
    %v570 = vmul.f32 %v435, %v498
    %v571 = vmul.f32 %v436, %v502
    %v572 = vmul.f32 %v437, %v506
    %v573 = vmul.f32 %v438, %v510
    %v574 = vmul.f32 %v439, %v514
    %v575 = vmul.f32 %v440, %v518
    %v576 = vmul.f32 %v441, %v522
    %v577 = vmul.f32 %v442, %v526
    %v578 = vmul.f32 %v443, %v530
    %v579 = vmul.f32 %v444, %v534
    %v580 = vmul.f32 %v445, %v538
    %v581 = vmul.f32 %v446, %v542
    %v582 = vmul.f32 %v447, %v546
    %v583 = vld [vmem:[#allocation10] sm:$0xff]
    %v584 = vld [vmem:[#allocation10 + $0x8] sm:$0xff]
    %v585 = vld [vmem:[#allocation10 + $0x10] sm:$0xff]
    %v586 = vld [vmem:[#allocation10 + $0x18] sm:$0xff]
    %s587 = scalar_lea.vmem [#allocation10], 32
    %v588 = vld [vmem:[%s587] sm:$0xff]
    %v589 = vld [vmem:[%s587 + $0x8] sm:$0xff]
    %v590 = vld [vmem:[%s587 + $0x10] sm:$0xff]
    %v591 = vld [vmem:[%s587 + $0x18] sm:$0xff]
    %vm592 = vcmask 261120
    %v594 = vsel %vm592, %v566, 0
    %v597 = vsel %vm592, %v567, 0
    %v600 = vsel %vm592, %v568, 0
    %v603 = vsel %vm592, %v569, 0
    %v606 = vsel %vm592, %v570, 0
    %v609 = vsel %vm592, %v571, 0
    %v612 = vsel %vm592, %v572, 0
    %v615 = vsel %vm592, %v573, 0
    %v618 = vsel %vm592, %v574, 0
    %v621 = vsel %vm592, %v575, 0
    %v624 = vsel %vm592, %v576, 0
    %v627 = vsel %vm592, %v577, 0
    %v630 = vsel %vm592, %v578, 0
    %v633 = vsel %vm592, %v579, 0
    %v636 = vsel %vm592, %v580, 0
    %v639 = vsel %vm592, %v581, 0
    %641 = vmatprep.subr.mxu0 0.0
    %642 = vmatpush1.msra.mxu0 %v588
    %643 = vmatprep.subr.mxu0 0.0
    %644 = vmatpush1.msra.mxu0 %v589
    %645 = vmatprep.subr.mxu0 0.0
    %646 = vmatpush1.msra.mxu0 %v590
    %647 = vmatprep.subr.mxu0 0.0
    %648 = vmatpush1.msra.mxu0 %v591
    %649 = vmatprep.subr.mxu0 0.0
    %650 = vmatpush1.msra.mxu0 0.0
    %651 = vmatprep.subr.mxu0 0.0
    %652 = vmatpush1.msra.mxu0 0.0
    %653 = vmatprep.subr.mxu0 0.0
    %654 = vmatpush1.msra.mxu0 0.0
    %655 = vmatprep.subr.mxu0 0.0
    %656 = vmatpush1.msra.mxu0 0.0
    %657 = vmatprep.subr.mxu0 0.0
    %658 = vmatpush1.msra.mxu0 0.0
    %659 = vmatprep.subr.mxu0 0.0
    %660 = vmatpush1.msra.mxu0 0.0
    %661 = vmatprep.subr.mxu0 0.0
    %662 = vmatpush1.msra.mxu0 0.0
    %663 = vmatprep.subr.mxu0 0.0
    %664 = vmatpush1.msra.mxu0 0.0
    %665 = vmatprep.subr.mxu0 0.0
    %666 = vmatpush1.msra.mxu0 0.0
    %667 = vmatprep.subr.mxu0 0.0
    %668 = vmatpush1.msra.mxu0 0.0
    %669 = vmatprep.subr.mxu0 0.0
    %670 = vmatpush1.msra.mxu0 0.0
    %671 = vmatprep.subr.mxu0 0.0
    %672 = vmatpush1.msra.mxu0 0.0
    %673 = vmatprep.subr.mxu0 0.0
    %674 = vmatpush1.msra.mxu0 0.0
    %675 = vmatprep.subr.mxu0 0.0
    %676 = vmatpush1.msra.mxu0 0.0
    %677 = vmatprep.subr.mxu0 0.0
    %678 = vmatpush1.msra.mxu0 0.0
    %679 = vmatprep.subr.mxu0 0.0
    %680 = vmatpush1.msra.mxu0 0.0
    %681 = vmatprep.subr.mxu0 0.0
    %682 = vmatpush1.msra.mxu0 0.0
    %683 = vmatprep.subr.mxu0 0.0
    %684 = vmatpush1.msra.mxu0 0.0
    %685 = vmatprep.subr.mxu0 0.0
    %686 = vmatpush1.msra.mxu0 0.0
    %687 = vmatprep.subr.mxu0 0.0
    %688 = vmatpush1.msra.mxu0 0.0
    %689 = vmatprep.subr.mxu0 0.0
    %690 = vmatpush1.msra.mxu0 0.0
    %691 = vmatprep.subr.mxu0 0.0
    %692 = vmatpush1.msra.mxu0 0.0
    %693 = vmatprep.subr.mxu0 0.0
    %694 = vmatpush1.msra.mxu0 0.0
    %695 = vmatprep.subr.mxu0 0.0
    %696 = vmatpush1.msra.mxu0 0.0
    %697 = vmatprep.subr.mxu0 0.0
    %698 = vmatpush1.msra.mxu0 0.0
    %699 = vmatprep.subr.mxu0 0.0
    %700 = vmatpush1.msra.mxu0 0.0
    %701 = vmatprep.subr.mxu0 0.0
    %702 = vmatpush1.msra.mxu0 0.0
    %703 = vmatprep.subr.mxu0 0.0
    %704 = vmatpush1.msra.mxu0 0.0
    %705 = vmatprep.mubr.f32.mxu0 0.0
    %706 = vmatmul.mubr.f32.gmra.mrb[0].mxu0 %v594
    %v707 = vpop.f32.mrb[0].mxu0
    %v708 = vadd.f32 0.0, %v707
    %v709 = vpop.f32.mrb[0].mxu0
    %710 = vmatprep.mubr.f32.mxu0 0.0
    %711 = vmatmul.mubr.f32.gmra.mrb[0].mxu0 %v597
    %v712 = vpop.f32.mrb[0].mxu0
    %v713 = vadd.f32 0.0, %v712
    %v714 = vpop.f32.mrb[0].mxu0
    %715 = vmatprep.mubr.f32.mxu0 0.0
    %716 = vmatmul.mubr.f32.gmra.mrb[0].mxu0 %v600
    %v717 = vpop.f32.mrb[0].mxu0
    %v718 = vadd.f32 0.0, %v717
    %v719 = vpop.f32.mrb[0].mxu0
    %720 = vmatprep.mubr.f32.mxu0 0.0
    %721 = vmatmul.mubr.f32.gmra.mrb[0].mxu0 %v603
    %v722 = vpop.f32.mrb[0].mxu0
    %v723 = vadd.f32 0.0, %v722
    %v724 = vpop.f32.mrb[0].mxu0
    %725 = vmatprep.mubr.f32.mxu0 0.0
    %726 = vmatmul.mubr.f32.gmra.mrb[0].mxu0 %v606
    %v727 = vpop.f32.mrb[0].mxu0
    %v728 = vadd.f32 0.0, %v727
    %v729 = vpop.f32.mrb[0].mxu0
    %730 = vmatprep.mubr.f32.mxu0 0.0
    %731 = vmatmul.mubr.f32.gmra.mrb[0].mxu0 %v609
    %v732 = vpop.f32.mrb[0].mxu0
    %v733 = vadd.f32 0.0, %v732
    %v734 = vpop.f32.mrb[0].mxu0
    %735 = vmatprep.mubr.f32.mxu0 0.0
    %736 = vmatmul.mubr.f32.gmra.mrb[0].mxu0 %v612
    %v737 = vpop.f32.mrb[0].mxu0
    %v738 = vadd.f32 0.0, %v737
    %v739 = vpop.f32.mrb[0].mxu0
    %740 = vmatprep.mubr.f32.mxu0 0.0
    %741 = vmatmul.mubr.f32.gmra.mrb[0].mxu0 %v615
    %v742 = vpop.f32.mrb[0].mxu0
    %v743 = vadd.f32 0.0, %v742
    %v744 = vpop.f32.mrb[0].mxu0
    %745 = vmatprep.mubr.f32.mxu0 0.0
    %746 = vmatmul.mubr.f32.gmra.mrb[0].mxu0 %v618
    %v747 = vpop.f32.mrb[0].mxu0
    %v748 = vadd.f32 0.0, %v747
    %v749 = vpop.f32.mrb[0].mxu0
    %750 = vmatprep.mubr.f32.mxu0 0.0
    %751 = vmatmul.mubr.f32.gmra.mrb[0].mxu0 %v621
    %v752 = vpop.f32.mrb[0].mxu0
    %v753 = vadd.f32 0.0, %v752
    %v754 = vpop.f32.mrb[0].mxu0
    %755 = vmatprep.mubr.f32.mxu0 0.0
    %756 = vmatmul.mubr.f32.gmra.mrb[0].mxu0 %v624
    %v757 = vpop.f32.mrb[0].mxu0
    %v758 = vadd.f32 0.0, %v757
    %v759 = vpop.f32.mrb[0].mxu0
    %760 = vmatprep.mubr.f32.mxu0 0.0
    %761 = vmatmul.mubr.f32.gmra.mrb[0].mxu0 %v627
    %v762 = vpop.f32.mrb[0].mxu0
    %v763 = vadd.f32 0.0, %v762
    %v764 = vpop.f32.mrb[0].mxu0
    %765 = vmatprep.mubr.f32.mxu0 0.0
    %766 = vmatmul.mubr.f32.gmra.mrb[0].mxu0 %v630
    %v767 = vpop.f32.mrb[0].mxu0
    %v768 = vadd.f32 0.0, %v767
    %v769 = vpop.f32.mrb[0].mxu0
    %770 = vmatprep.mubr.f32.mxu0 0.0
    %771 = vmatmul.mubr.f32.gmra.mrb[0].mxu0 %v633
    %v772 = vpop.f32.mrb[0].mxu0
    %v773 = vadd.f32 0.0, %v772
    %v774 = vpop.f32.mrb[0].mxu0
    %775 = vmatprep.mubr.f32.mxu0 0.0
    %776 = vmatmul.mubr.f32.gmra.mrb[0].mxu0 %v636
    %v777 = vpop.f32.mrb[0].mxu0
    %v778 = vadd.f32 0.0, %v777
    %v779 = vpop.f32.mrb[0].mxu0
    %780 = vmatprep.mubr.f32.mxu0 0.0
    %781 = vmatmul.mubr.f32.gmra.mrb[0].mxu0 %v639
    %v782 = vpop.f32.mrb[0].mxu0
    %v783 = vadd.f32 0.0, %v782
    %v784 = vpop.f32.mrb[0].mxu0
    %785 = vdwg.mxu0
    %v787 = vsel %vm592, %v565, 0
    %789 = vmatprep.subr.mxu0 0.0
    %790 = vmatpush1.msra.mxu0 %v583
    %791 = vmatprep.subr.mxu0 0.0
    %792 = vmatpush1.msra.mxu0 %v584
    %793 = vmatprep.subr.mxu0 0.0
    %794 = vmatpush1.msra.mxu0 %v585
    %795 = vmatprep.subr.mxu0 0.0
    %796 = vmatpush1.msra.mxu0 %v586
    %797 = vmatprep.subr.mxu0 0.0
    %798 = vmatpush1.msra.mxu0 0.0
    %799 = vmatprep.subr.mxu0 0.0
    %800 = vmatpush1.msra.mxu0 0.0
    %801 = vmatprep.subr.mxu0 0.0
    %802 = vmatpush1.msra.mxu0 0.0
    %803 = vmatprep.subr.mxu0 0.0
    %804 = vmatpush1.msra.mxu0 0.0
    %805 = vmatprep.subr.mxu0 0.0
    %806 = vmatpush1.msra.mxu0 0.0
    %807 = vmatprep.subr.mxu0 0.0
    %808 = vmatpush1.msra.mxu0 0.0
    %809 = vmatprep.subr.mxu0 0.0
    %810 = vmatpush1.msra.mxu0 0.0
    %811 = vmatprep.subr.mxu0 0.0
    %812 = vmatpush1.msra.mxu0 0.0
    %813 = vmatprep.subr.mxu0 0.0
    %814 = vmatpush1.msra.mxu0 0.0
    %815 = vmatprep.subr.mxu0 0.0
    %816 = vmatpush1.msra.mxu0 0.0
    %817 = vmatprep.subr.mxu0 0.0
    %818 = vmatpush1.msra.mxu0 0.0
    %819 = vmatprep.subr.mxu0 0.0
    %820 = vmatpush1.msra.mxu0 0.0
    %821 = vmatprep.subr.mxu0 0.0
    %822 = vmatpush1.msra.mxu0 0.0
    %823 = vmatprep.subr.mxu0 0.0
    %824 = vmatpush1.msra.mxu0 0.0
    %825 = vmatprep.subr.mxu0 0.0
    %826 = vmatpush1.msra.mxu0 0.0
    %827 = vmatprep.subr.mxu0 0.0
    %828 = vmatpush1.msra.mxu0 0.0
    %829 = vmatprep.subr.mxu0 0.0
    %830 = vmatpush1.msra.mxu0 0.0
    %831 = vmatprep.subr.mxu0 0.0
    %832 = vmatpush1.msra.mxu0 0.0
    %833 = vmatprep.subr.mxu0 0.0
    %834 = vmatpush1.msra.mxu0 0.0
    %835 = vmatprep.subr.mxu0 0.0
    %836 = vmatpush1.msra.mxu0 0.0
    %837 = vmatprep.subr.mxu0 0.0
    %838 = vmatpush1.msra.mxu0 0.0
    %839 = vmatprep.subr.mxu0 0.0
    %840 = vmatpush1.msra.mxu0 0.0
    %841 = vmatprep.subr.mxu0 0.0
    %842 = vmatpush1.msra.mxu0 0.0
    %843 = vmatprep.subr.mxu0 0.0
    %844 = vmatpush1.msra.mxu0 0.0
    %845 = vmatprep.subr.mxu0 0.0
    %846 = vmatpush1.msra.mxu0 0.0
    %847 = vmatprep.subr.mxu0 0.0
    %848 = vmatpush1.msra.mxu0 0.0
    %849 = vmatprep.subr.mxu0 0.0
    %850 = vmatpush1.msra.mxu0 0.0
    %851 = vmatprep.subr.mxu0 0.0
    %852 = vmatpush1.msra.mxu0 0.0
    %853 = vmatprep.mubr.f32.mxu0 0.0
    %854 = vmatmul.mubr.f32.gmra.mrb[0].mxu0 %v787
    %v855 = vpop.f32.mrb[0].mxu0
    %v856 = vadd.f32 %v708, %v855
    %v857 = vpop.f32.mrb[0].mxu0
    %858 = vmatprep.mubr.f32.mxu0 0.0
    %859 = vmatmul.mubr.f32.gmra.mrb[0].mxu0 %v594
    %v860 = vpop.f32.mrb[0].mxu0
    %v861 = vadd.f32 %v713, %v860
    %v862 = vpop.f32.mrb[0].mxu0
    %863 = vmatprep.mubr.f32.mxu0 0.0
    %864 = vmatmul.mubr.f32.gmra.mrb[0].mxu0 %v597
    %v865 = vpop.f32.mrb[0].mxu0
    %v866 = vadd.f32 %v718, %v865
    %v867 = vpop.f32.mrb[0].mxu0
    %868 = vmatprep.mubr.f32.mxu0 0.0
    %869 = vmatmul.mubr.f32.gmra.mrb[0].mxu0 %v600
    %v870 = vpop.f32.mrb[0].mxu0
    %v871 = vadd.f32 %v723, %v870
    %v872 = vpop.f32.mrb[0].mxu0
    %873 = vmatprep.mubr.f32.mxu0 0.0
    %874 = vmatmul.mubr.f32.gmra.mrb[0].mxu0 %v603
    %v875 = vpop.f32.mrb[0].mxu0
    %v876 = vadd.f32 %v728, %v875
    %v877 = vpop.f32.mrb[0].mxu0
    %878 = vmatprep.mubr.f32.mxu0 0.0
    %879 = vmatmul.mubr.f32.gmra.mrb[0].mxu0 %v606
    %v880 = vpop.f32.mrb[0].mxu0
    %v881 = vadd.f32 %v733, %v880
    %v882 = vpop.f32.mrb[0].mxu0
    %883 = vmatprep.mubr.f32.mxu0 0.0
    %884 = vmatmul.mubr.f32.gmra.mrb[0].mxu0 %v609
    %v885 = vpop.f32.mrb[0].mxu0
    %v886 = vadd.f32 %v738, %v885
    %v887 = vpop.f32.mrb[0].mxu0
    %888 = vmatprep.mubr.f32.mxu0 0.0
    %889 = vmatmul.mubr.f32.gmra.mrb[0].mxu0 %v612
    %v890 = vpop.f32.mrb[0].mxu0
    %v891 = vadd.f32 %v743, %v890
    %v892 = vpop.f32.mrb[0].mxu0
    %893 = vmatprep.mubr.f32.mxu0 0.0
    %894 = vmatmul.mubr.f32.gmra.mrb[0].mxu0 %v615
    %v895 = vpop.f32.mrb[0].mxu0
    %v896 = vadd.f32 %v748, %v895
    %v897 = vpop.f32.mrb[0].mxu0
    %898 = vmatprep.mubr.f32.mxu0 0.0
    %899 = vmatmul.mubr.f32.gmra.mrb[0].mxu0 %v618
    %v900 = vpop.f32.mrb[0].mxu0
    %v901 = vadd.f32 %v753, %v900
    %v902 = vpop.f32.mrb[0].mxu0
    %903 = vmatprep.mubr.f32.mxu0 0.0
    %904 = vmatmul.mubr.f32.gmra.mrb[0].mxu0 %v621
    %v905 = vpop.f32.mrb[0].mxu0
    %v906 = vadd.f32 %v758, %v905
    %v907 = vpop.f32.mrb[0].mxu0
    %908 = vmatprep.mubr.f32.mxu0 0.0
    %909 = vmatmul.mubr.f32.gmra.mrb[0].mxu0 %v624
    %v910 = vpop.f32.mrb[0].mxu0
    %v911 = vadd.f32 %v763, %v910
    %v912 = vpop.f32.mrb[0].mxu0
    %913 = vmatprep.mubr.f32.mxu0 0.0
    %914 = vmatmul.mubr.f32.gmra.mrb[0].mxu0 %v627
    %v915 = vpop.f32.mrb[0].mxu0
    %v916 = vadd.f32 %v768, %v915
    %v917 = vpop.f32.mrb[0].mxu0
    %918 = vmatprep.mubr.f32.mxu0 0.0
    %919 = vmatmul.mubr.f32.gmra.mrb[0].mxu0 %v630
    %v920 = vpop.f32.mrb[0].mxu0
    %v921 = vadd.f32 %v773, %v920
    %v922 = vpop.f32.mrb[0].mxu0
    %923 = vmatprep.mubr.f32.mxu0 0.0
    %924 = vmatmul.mubr.f32.gmra.mrb[0].mxu0 %v633
    %v925 = vpop.f32.mrb[0].mxu0
    %v926 = vadd.f32 %v778, %v925
    %v927 = vpop.f32.mrb[0].mxu0
    %928 = vmatprep.mubr.f32.mxu0 0.0
    %929 = vmatmul.mubr.f32.gmra.mrb[0].mxu0 %v636
    %v930 = vpop.f32.mrb[0].mxu0
    %v931 = vadd.f32 %v783, %v930
    %v932 = vpop.f32.mrb[0].mxu0
    %933 = vdwg.mxu0
    %s934 = scalar_lea.vmem [#allocation10], 64
    %v935 = vld [vmem:[%s934] sm:$0xff]
    %v936 = vld [vmem:[%s934 + $0x8] sm:$0xff]
    %v937 = vld [vmem:[%s934 + $0x10] sm:$0xff]
    %v938 = vld [vmem:[%s934 + $0x18] sm:$0xff]
    %v940 = vsel %vm592, %v582, 0
    %942 = vmatprep.subr.mxu0 0.0
    %943 = vmatpush1.msra.mxu0 %v935
    %944 = vmatprep.subr.mxu0 0.0
    %945 = vmatpush1.msra.mxu0 %v936
    %946 = vmatprep.subr.mxu0 0.0
    %947 = vmatpush1.msra.mxu0 %v937
    %948 = vmatprep.subr.mxu0 0.0
    %949 = vmatpush1.msra.mxu0 %v938
    %950 = vmatprep.subr.mxu0 0.0
    %951 = vmatpush1.msra.mxu0 0.0
    %952 = vmatprep.subr.mxu0 0.0
    %953 = vmatpush1.msra.mxu0 0.0
    %954 = vmatprep.subr.mxu0 0.0
    %955 = vmatpush1.msra.mxu0 0.0
    %956 = vmatprep.subr.mxu0 0.0
    %957 = vmatpush1.msra.mxu0 0.0
    %958 = vmatprep.subr.mxu0 0.0
    %959 = vmatpush1.msra.mxu0 0.0
    %960 = vmatprep.subr.mxu0 0.0
    %961 = vmatpush1.msra.mxu0 0.0
    %962 = vmatprep.subr.mxu0 0.0
    %963 = vmatpush1.msra.mxu0 0.0
    %964 = vmatprep.subr.mxu0 0.0
    %965 = vmatpush1.msra.mxu0 0.0
    %966 = vmatprep.subr.mxu0 0.0
    %967 = vmatpush1.msra.mxu0 0.0
    %968 = vmatprep.subr.mxu0 0.0
    %969 = vmatpush1.msra.mxu0 0.0
    %970 = vmatprep.subr.mxu0 0.0
    %971 = vmatpush1.msra.mxu0 0.0
    %972 = vmatprep.subr.mxu0 0.0
    %973 = vmatpush1.msra.mxu0 0.0
    %974 = vmatprep.subr.mxu0 0.0
    %975 = vmatpush1.msra.mxu0 0.0
    %976 = vmatprep.subr.mxu0 0.0
    %977 = vmatpush1.msra.mxu0 0.0
    %978 = vmatprep.subr.mxu0 0.0
    %979 = vmatpush1.msra.mxu0 0.0
    %980 = vmatprep.subr.mxu0 0.0
    %981 = vmatpush1.msra.mxu0 0.0
    %982 = vmatprep.subr.mxu0 0.0
    %983 = vmatpush1.msra.mxu0 0.0
    %984 = vmatprep.subr.mxu0 0.0
    %985 = vmatpush1.msra.mxu0 0.0
    %986 = vmatprep.subr.mxu0 0.0
    %987 = vmatpush1.msra.mxu0 0.0
    %988 = vmatprep.subr.mxu0 0.0
    %989 = vmatpush1.msra.mxu0 0.0
    %990 = vmatprep.subr.mxu0 0.0
    %991 = vmatpush1.msra.mxu0 0.0
    %992 = vmatprep.subr.mxu0 0.0
    %993 = vmatpush1.msra.mxu0 0.0
    %994 = vmatprep.subr.mxu0 0.0
    %995 = vmatpush1.msra.mxu0 0.0
    %996 = vmatprep.subr.mxu0 0.0
    %997 = vmatpush1.msra.mxu0 0.0
    %998 = vmatprep.subr.mxu0 0.0
    %999 = vmatpush1.msra.mxu0 0.0
    %1000 = vmatprep.subr.mxu0 0.0
    %1001 = vmatpush1.msra.mxu0 0.0
    %1002 = vmatprep.subr.mxu0 0.0
    %1003 = vmatpush1.msra.mxu0 0.0
    %1004 = vmatprep.subr.mxu0 0.0
    %1005 = vmatpush1.msra.mxu0 0.0
    %1006 = vmatprep.mubr.f32.mxu0 0.0
    %1007 = vmatmul.mubr.f32.gmra.mrb[0].mxu0 %v597
    %v1008 = vpop.f32.mrb[0].mxu0
    %v1009 = vadd.f32 0.0, %v1008
    %v1010 = vpop.f32.mrb[0].mxu0
    %1011 = vmatprep.mubr.f32.mxu0 0.0
    %1012 = vmatmul.mubr.f32.gmra.mrb[0].mxu0 %v600
    %v1013 = vpop.f32.mrb[0].mxu0
    %v1014 = vadd.f32 0.0, %v1013
    %v1015 = vpop.f32.mrb[0].mxu0
    %1016 = vmatprep.mubr.f32.mxu0 0.0
    %1017 = vmatmul.mubr.f32.gmra.mrb[0].mxu0 %v603
    %v1018 = vpop.f32.mrb[0].mxu0
    %v1019 = vadd.f32 0.0, %v1018
    %v1020 = vpop.f32.mrb[0].mxu0
    %1021 = vmatprep.mubr.f32.mxu0 0.0
    %1022 = vmatmul.mubr.f32.gmra.mrb[0].mxu0 %v606
    %v1023 = vpop.f32.mrb[0].mxu0
    %v1024 = vadd.f32 0.0, %v1023
    %v1025 = vpop.f32.mrb[0].mxu0
    %1026 = vmatprep.mubr.f32.mxu0 0.0
    %1027 = vmatmul.mubr.f32.gmra.mrb[0].mxu0 %v609
    %v1028 = vpop.f32.mrb[0].mxu0
    %v1029 = vadd.f32 0.0, %v1028
    %v1030 = vpop.f32.mrb[0].mxu0
    %1031 = vmatprep.mubr.f32.mxu0 0.0
    %1032 = vmatmul.mubr.f32.gmra.mrb[0].mxu0 %v612
    %v1033 = vpop.f32.mrb[0].mxu0
    %v1034 = vadd.f32 0.0, %v1033
    %v1035 = vpop.f32.mrb[0].mxu0
    %1036 = vmatprep.mubr.f32.mxu0 0.0
    %1037 = vmatmul.mubr.f32.gmra.mrb[0].mxu0 %v615
    %v1038 = vpop.f32.mrb[0].mxu0
    %v1039 = vadd.f32 0.0, %v1038
    %v1040 = vpop.f32.mrb[0].mxu0
    %1041 = vmatprep.mubr.f32.mxu0 0.0
    %1042 = vmatmul.mubr.f32.gmra.mrb[0].mxu0 %v618
    %v1043 = vpop.f32.mrb[0].mxu0
    %v1044 = vadd.f32 0.0, %v1043
    %v1045 = vpop.f32.mrb[0].mxu0
    %1046 = vmatprep.mubr.f32.mxu0 0.0
    %1047 = vmatmul.mubr.f32.gmra.mrb[0].mxu0 %v621
    %v1048 = vpop.f32.mrb[0].mxu0
    %v1049 = vadd.f32 0.0, %v1048
    %v1050 = vpop.f32.mrb[0].mxu0
    %1051 = vmatprep.mubr.f32.mxu0 0.0
    %1052 = vmatmul.mubr.f32.gmra.mrb[0].mxu0 %v624
    %v1053 = vpop.f32.mrb[0].mxu0
    %v1054 = vadd.f32 0.0, %v1053
    %v1055 = vpop.f32.mrb[0].mxu0
    %1056 = vmatprep.mubr.f32.mxu0 0.0
    %1057 = vmatmul.mubr.f32.gmra.mrb[0].mxu0 %v627
    %v1058 = vpop.f32.mrb[0].mxu0
    %v1059 = vadd.f32 0.0, %v1058
    %v1060 = vpop.f32.mrb[0].mxu0
    %1061 = vmatprep.mubr.f32.mxu0 0.0
    %1062 = vmatmul.mubr.f32.gmra.mrb[0].mxu0 %v630
    %v1063 = vpop.f32.mrb[0].mxu0
    %v1064 = vadd.f32 0.0, %v1063
    %v1065 = vpop.f32.mrb[0].mxu0
    %1066 = vmatprep.mubr.f32.mxu0 0.0
    %1067 = vmatmul.mubr.f32.gmra.mrb[0].mxu0 %v633
    %v1068 = vpop.f32.mrb[0].mxu0
    %v1069 = vadd.f32 0.0, %v1068
    %v1070 = vpop.f32.mrb[0].mxu0
    %1071 = vmatprep.mubr.f32.mxu0 0.0
    %1072 = vmatmul.mubr.f32.gmra.mrb[0].mxu0 %v636
    %v1073 = vpop.f32.mrb[0].mxu0
    %v1074 = vadd.f32 0.0, %v1073
    %v1075 = vpop.f32.mrb[0].mxu0
    %1076 = vmatprep.mubr.f32.mxu0 0.0
    %1077 = vmatmul.mubr.f32.gmra.mrb[0].mxu0 %v639
    %v1078 = vpop.f32.mrb[0].mxu0
    %v1079 = vadd.f32 0.0, %v1078
    %v1080 = vpop.f32.mrb[0].mxu0
    %1081 = vmatprep.mubr.f32.mxu0 0.0
    %1082 = vmatmul.mubr.f32.gmra.mrb[0].mxu0 %v940
    %v1083 = vpop.f32.mrb[0].mxu0
    %v1084 = vadd.f32 0.0, %v1083
    %v1085 = vpop.f32.mrb[0].mxu0
    %1086 = vdwg.mxu0
    %v1087 = vadd.f32 %v856, %v1009
    %v1088 = vadd.f32 %v861, %v1014
    %v1089 = vadd.f32 %v866, %v1019
    %v1090 = vadd.f32 %v871, %v1024
    %v1091 = vadd.f32 %v876, %v1029
    %v1092 = vadd.f32 %v881, %v1034
    %v1093 = vadd.f32 %v886, %v1039
    %v1094 = vadd.f32 %v891, %v1044
    %v1095 = vadd.f32 %v896, %v1049
    %v1096 = vadd.f32 %v901, %v1054
    %v1097 = vadd.f32 %v906, %v1059
    %v1098 = vadd.f32 %v911, %v1064
    %v1099 = vadd.f32 %v916, %v1069
    %v1100 = vadd.f32 %v921, %v1074
    %v1101 = vadd.f32 %v926, %v1079
    %v1102 = vadd.f32 %v931, %v1084
    %v1103 = vld [vmem:[#allocation12] sm:$0x1]
    %v1105 = vlaneseq
    %v1106 = vshrl.u32 %v1105, 7
    %v1107 = vsub.s32 0, %v1106
    %v1108 = vrot.slane %v1103, %v1107
    %v1110 = vadd.f32 %v1087, %v1108
    %v1111 = vadd.f32 %v1088, %v1108
    %v1112 = vadd.f32 %v1089, %v1108
    %v1113 = vadd.f32 %v1090, %v1108
    %v1114 = vadd.f32 %v1091, %v1108
    %v1115 = vadd.f32 %v1092, %v1108
    %v1116 = vadd.f32 %v1093, %v1108
    %v1117 = vadd.f32 %v1094, %v1108
    %v1118 = vadd.f32 %v1095, %v1108
    %v1119 = vadd.f32 %v1096, %v1108
    %v1120 = vadd.f32 %v1097, %v1108
    %v1121 = vadd.f32 %v1098, %v1108
    %v1122 = vadd.f32 %v1099, %v1108
    %v1123 = vadd.f32 %v1100, %v1108
    %v1124 = vadd.f32 %v1101, %v1108
    %v1125 = vadd.f32 %v1102, %v1108
    %v1126 = vmax.f32 %v1110, 0.0
    %v1127 = vmax.f32 %v1111, 0.0
    %v1128 = vmax.f32 %v1112, 0.0
    %v1129 = vmax.f32 %v1113, 0.0
    %v1130 = vmax.f32 %v1114, 0.0
    %v1131 = vmax.f32 %v1115, 0.0
    %v1132 = vmax.f32 %v1116, 0.0
    %v1133 = vmax.f32 %v1117, 0.0
    %v1134 = vmax.f32 %v1118, 0.0
    %v1135 = vmax.f32 %v1119, 0.0
    %v1136 = vmax.f32 %v1120, 0.0
    %v1137 = vmax.f32 %v1121, 0.0
    %v1138 = vmax.f32 %v1122, 0.0
    %v1139 = vmax.f32 %v1123, 0.0
    %v1140 = vmax.f32 %v1124, 0.0
    %v1141 = vmax.f32 %v1125, 0.0
    %v1142 = vld [vmem:[#allocation13] sm:$0xff]
    %v1143 = vld [vmem:[#allocation13 + $0x8] sm:$0xff]
    %v1144 = vld [vmem:[#allocation13 + $0x10] sm:$0xff]
    %v1145 = vld [vmem:[#allocation13 + $0x18] sm:$0xff]
    %v1146 = vld [vmem:[#allocation13 + $0x20] sm:$0xff]
    %v1147 = vld [vmem:[#allocation13 + $0x28] sm:$0xff]
    %v1148 = vld [vmem:[#allocation13 + $0x30] sm:$0xff]
    %v1149 = vld [vmem:[#allocation13 + $0x38] sm:$0xff]
    %v1150 = vld [vmem:[#allocation13 + $0x40] sm:$0xff]
    %v1151 = vld [vmem:[#allocation13 + $0x48] sm:$0xff]
    %v1152 = vld [vmem:[#allocation13 + $0x50] sm:$0xff]
    %v1153 = vld [vmem:[#allocation13 + $0x58] sm:$0xff]
    %v1154 = vld [vmem:[#allocation13 + $0x60] sm:$0xff]
    %v1155 = vld [vmem:[#allocation13 + $0x68] sm:$0xff]
    %v1156 = vld [vmem:[#allocation13 + $0x70] sm:$0xff]
    %v1157 = vld [vmem:[#allocation13 + $0x78] sm:$0xff]
    %v1158 = vld [vmem:[#allocation13 + $0x80] sm:$0xff]
    %v1159 = vld [vmem:[#allocation13 + $0x88] sm:$0xff]
    %v1160 = vld [vmem:[#allocation13 + $0x90] sm:$0xff]
    %v1161 = vld [vmem:[#allocation13 + $0x98] sm:$0xff]
    %v1162 = vld [vmem:[#allocation13 + $0xa0] sm:$0xff]
    %v1163 = vld [vmem:[#allocation13 + $0xa8] sm:$0xff]
    %v1164 = vld [vmem:[#allocation13 + $0xb0] sm:$0xff]
    %v1165 = vld [vmem:[#allocation13 + $0xb8] sm:$0xff]
    %v1166 = vld [vmem:[#allocation13 + $0xc0] sm:$0xff]
    %v1167 = vld [vmem:[#allocation13 + $0xc8] sm:$0xff]
    %v1168 = vld [vmem:[#allocation13 + $0xd0] sm:$0xff]
    %v1169 = vld [vmem:[#allocation13 + $0xd8] sm:$0xff]
    %v1170 = vld [vmem:[#allocation13 + $0xe0] sm:$0xff]
    %v1171 = vld [vmem:[#allocation13 + $0xe8] sm:$0xff]
    %v1172 = vld [vmem:[#allocation13 + $0xf0] sm:$0xff]
    %v1173 = vld [vmem:[#allocation13 + $0xf8] sm:$0xff]
    %v1174 = vld [vmem:[#allocation13 + $0x100] sm:$0xff]
    %v1175 = vld [vmem:[#allocation13 + $0x108] sm:$0xff]
    %v1176 = vld [vmem:[#allocation13 + $0x110] sm:$0xff]
    %v1177 = vld [vmem:[#allocation13 + $0x118] sm:$0xff]
    %v1178 = vld [vmem:[#allocation13 + $0x120] sm:$0xff]
    %v1179 = vld [vmem:[#allocation13 + $0x128] sm:$0xff]
    %v1180 = vld [vmem:[#allocation13 + $0x130] sm:$0xff]
    %v1181 = vld [vmem:[#allocation13 + $0x138] sm:$0xff]
    %v1182 = vld [vmem:[#allocation13 + $0x140] sm:$0xff]
    %v1183 = vld [vmem:[#allocation13 + $0x148] sm:$0xff]
    %v1184 = vld [vmem:[#allocation13 + $0x150] sm:$0xff]
    %v1185 = vld [vmem:[#allocation13 + $0x158] sm:$0xff]
    %v1186 = vld [vmem:[#allocation13 + $0x160] sm:$0xff]
    %v1187 = vld [vmem:[#allocation13 + $0x168] sm:$0xff]
    %v1188 = vld [vmem:[#allocation13 + $0x170] sm:$0xff]
    %v1189 = vld [vmem:[#allocation13 + $0x178] sm:$0xff]
    %v1190 = vld [vmem:[#allocation13 + $0x180] sm:$0xff]
    %v1191 = vld [vmem:[#allocation13 + $0x188] sm:$0xff]
    %v1192 = vld [vmem:[#allocation13 + $0x190] sm:$0xff]
    %v1193 = vld [vmem:[#allocation13 + $0x198] sm:$0xff]
    %v1194 = vld [vmem:[#allocation13 + $0x1a0] sm:$0xff]
    %v1195 = vld [vmem:[#allocation13 + $0x1a8] sm:$0xff]
    %v1196 = vld [vmem:[#allocation13 + $0x1b0] sm:$0xff]
    %v1197 = vld [vmem:[#allocation13 + $0x1b8] sm:$0xff]
    %v1198 = vld [vmem:[#allocation13 + $0x1c0] sm:$0xff]
    %v1199 = vld [vmem:[#allocation13 + $0x1c8] sm:$0xff]
    %v1200 = vld [vmem:[#allocation13 + $0x1d0] sm:$0xff]
    %v1201 = vld [vmem:[#allocation13 + $0x1d8] sm:$0xff]
    %v1202 = vld [vmem:[#allocation13 + $0x1e0] sm:$0xff]
    %v1203 = vld [vmem:[#allocation13 + $0x1e8] sm:$0xff]
    %v1204 = vld [vmem:[#allocation13 + $0x1f0] sm:$0xff]
    %v1205 = vld [vmem:[#allocation13 + $0x1f8] sm:$0xff]
    %v1206 = vld [vmem:[#allocation13 + $0x200] sm:$0xff]
    %v1207 = vld [vmem:[#allocation13 + $0x208] sm:$0xff]
    %v1208 = vld [vmem:[#allocation13 + $0x210] sm:$0xff]
    %v1209 = vld [vmem:[#allocation13 + $0x218] sm:$0xff]
    %v1210 = vld [vmem:[#allocation13 + $0x220] sm:$0xff]
    %v1211 = vld [vmem:[#allocation13 + $0x228] sm:$0xff]
    %v1212 = vld [vmem:[#allocation13 + $0x230] sm:$0xff]
    %v1213 = vld [vmem:[#allocation13 + $0x238] sm:$0xff]
    %v1214 = vld [vmem:[#allocation13 + $0x240] sm:$0xff]
    %v1215 = vld [vmem:[#allocation13 + $0x248] sm:$0xff]
    %v1216 = vld [vmem:[#allocation13 + $0x250] sm:$0xff]
    %v1217 = vld [vmem:[#allocation13 + $0x258] sm:$0xff]
    %v1218 = vld [vmem:[#allocation13 + $0x260] sm:$0xff]
    %v1219 = vld [vmem:[#allocation13 + $0x268] sm:$0xff]
    %v1220 = vld [vmem:[#allocation13 + $0x270] sm:$0xff]
    %v1221 = vld [vmem:[#allocation13 + $0x278] sm:$0xff]
    %v1222 = vld [vmem:[#allocation13 + $0x280] sm:$0xff]
    %v1223 = vld [vmem:[#allocation13 + $0x288] sm:$0xff]
    %v1224 = vld [vmem:[#allocation13 + $0x290] sm:$0xff]
    %v1225 = vld [vmem:[#allocation13 + $0x298] sm:$0xff]
    %v1226 = vld [vmem:[#allocation13 + $0x2a0] sm:$0xff]
    %v1227 = vld [vmem:[#allocation13 + $0x2a8] sm:$0xff]
    %v1228 = vld [vmem:[#allocation13 + $0x2b0] sm:$0xff]
    %v1229 = vld [vmem:[#allocation13 + $0x2b8] sm:$0xff]
    %v1230 = vld [vmem:[#allocation13 + $0x2c0] sm:$0xff]
    %v1231 = vld [vmem:[#allocation13 + $0x2c8] sm:$0xff]
    %v1232 = vld [vmem:[#allocation13 + $0x2d0] sm:$0xff]
    %v1233 = vld [vmem:[#allocation13 + $0x2d8] sm:$0xff]
    %v1234 = vld [vmem:[#allocation13 + $0x2e0] sm:$0xff]
    %v1235 = vld [vmem:[#allocation13 + $0x2e8] sm:$0xff]
    %v1236 = vld [vmem:[#allocation13 + $0x2f0] sm:$0xff]
    %v1237 = vld [vmem:[#allocation13 + $0x2f8] sm:$0xff]
    %v1238 = vld [vmem:[#allocation13 + $0x300] sm:$0xff]
    %v1239 = vld [vmem:[#allocation13 + $0x308] sm:$0xff]
    %v1240 = vld [vmem:[#allocation13 + $0x310] sm:$0xff]
    %v1241 = vld [vmem:[#allocation13 + $0x318] sm:$0xff]
    %v1242 = vld [vmem:[#allocation13 + $0x320] sm:$0xff]
    %v1243 = vld [vmem:[#allocation13 + $0x328] sm:$0xff]
    %v1244 = vld [vmem:[#allocation13 + $0x330] sm:$0xff]
    %v1245 = vld [vmem:[#allocation13 + $0x338] sm:$0xff]
    %v1246 = vld [vmem:[#allocation13 + $0x340] sm:$0xff]
    %v1247 = vld [vmem:[#allocation13 + $0x348] sm:$0xff]
    %v1248 = vld [vmem:[#allocation13 + $0x350] sm:$0xff]
    %v1249 = vld [vmem:[#allocation13 + $0x358] sm:$0xff]
    %v1250 = vld [vmem:[#allocation13 + $0x360] sm:$0xff]
    %v1251 = vld [vmem:[#allocation13 + $0x368] sm:$0xff]
    %v1252 = vld [vmem:[#allocation13 + $0x370] sm:$0xff]
    %v1253 = vld [vmem:[#allocation13 + $0x378] sm:$0xff]
    %v1254 = vld [vmem:[#allocation13 + $0x380] sm:$0xff]
    %v1255 = vld [vmem:[#allocation13 + $0x388] sm:$0xff]
    %v1256 = vld [vmem:[#allocation13 + $0x390] sm:$0xff]
    %v1257 = vld [vmem:[#allocation13 + $0x398] sm:$0xff]
    %v1258 = vld [vmem:[#allocation13 + $0x3a0] sm:$0xff]
    %v1259 = vld [vmem:[#allocation13 + $0x3a8] sm:$0xff]
    %v1260 = vld [vmem:[#allocation13 + $0x3b0] sm:$0xff]
    %v1261 = vld [vmem:[#allocation13 + $0x3b8] sm:$0xff]
    %v1262 = vld [vmem:[#allocation13 + $0x3c0] sm:$0xff]
    %v1263 = vld [vmem:[#allocation13 + $0x3c8] sm:$0xff]
    %v1264 = vld [vmem:[#allocation13 + $0x3d0] sm:$0xff]
    %v1265 = vld [vmem:[#allocation13 + $0x3d8] sm:$0xff]
    %v1266 = vld [vmem:[#allocation13 + $0x3e0] sm:$0xff]
    %v1267 = vld [vmem:[#allocation13 + $0x3e8] sm:$0xff]
    %v1268 = vld [vmem:[#allocation13 + $0x3f0] sm:$0xff]
    %v1269 = vld [vmem:[#allocation13 + $0x3f8] sm:$0xff]
    %vm1270 = vcmask 523264
    %v1272 = vsel %vm1270, %v1126, 0
    %1274 = vmatprep.subr.mxu0 0.0
    %1275 = vmatpush1.msra.mxu0 %v1142
    %1276 = vmatprep.subr.mxu0 0.0
    %1277 = vmatpush1.msra.mxu0 %v1143
    %1278 = vmatprep.subr.mxu0 0.0
    %1279 = vmatpush1.msra.mxu0 %v1144
    %1280 = vmatprep.subr.mxu0 0.0
    %1281 = vmatpush1.msra.mxu0 %v1145
    %1282 = vmatprep.subr.mxu0 0.0
    %1283 = vmatpush1.msra.mxu0 %v1146
    %1284 = vmatprep.subr.mxu0 0.0
    %1285 = vmatpush1.msra.mxu0 %v1147
    %1286 = vmatprep.subr.mxu0 0.0
    %1287 = vmatpush1.msra.mxu0 %v1148
    %1288 = vmatprep.subr.mxu0 0.0
    %1289 = vmatpush1.msra.mxu0 %v1149
    %1290 = vmatprep.subr.mxu0 0.0
    %1291 = vmatpush1.msra.mxu0 0.0
    %1292 = vmatprep.subr.mxu0 0.0
    %1293 = vmatpush1.msra.mxu0 0.0
    %1294 = vmatprep.subr.mxu0 0.0
    %1295 = vmatpush1.msra.mxu0 0.0
    %1296 = vmatprep.subr.mxu0 0.0
    %1297 = vmatpush1.msra.mxu0 0.0
    %1298 = vmatprep.subr.mxu0 0.0
    %1299 = vmatpush1.msra.mxu0 0.0
    %1300 = vmatprep.subr.mxu0 0.0
    %1301 = vmatpush1.msra.mxu0 0.0
    %1302 = vmatprep.subr.mxu0 0.0
    %1303 = vmatpush1.msra.mxu0 0.0
    %1304 = vmatprep.subr.mxu0 0.0
    %1305 = vmatpush1.msra.mxu0 0.0
    %1306 = vmatprep.subr.mxu0 0.0
    %1307 = vmatpush1.msra.mxu0 0.0
    %1308 = vmatprep.subr.mxu0 0.0
    %1309 = vmatpush1.msra.mxu0 0.0
    %1310 = vmatprep.subr.mxu0 0.0
    %1311 = vmatpush1.msra.mxu0 0.0
    %1312 = vmatprep.subr.mxu0 0.0
    %1313 = vmatpush1.msra.mxu0 0.0
    %1314 = vmatprep.subr.mxu0 0.0
    %1315 = vmatpush1.msra.mxu0 0.0
    %1316 = vmatprep.subr.mxu0 0.0
    %1317 = vmatpush1.msra.mxu0 0.0
    %1318 = vmatprep.subr.mxu0 0.0
    %1319 = vmatpush1.msra.mxu0 0.0
    %1320 = vmatprep.subr.mxu0 0.0
    %1321 = vmatpush1.msra.mxu0 0.0
    %1322 = vmatprep.subr.mxu0 0.0
    %1323 = vmatpush1.msra.mxu0 0.0
    %1324 = vmatprep.subr.mxu0 0.0
    %1325 = vmatpush1.msra.mxu0 0.0
    %1326 = vmatprep.subr.mxu0 0.0
    %1327 = vmatpush1.msra.mxu0 0.0
    %1328 = vmatprep.subr.mxu0 0.0
    %1329 = vmatpush1.msra.mxu0 0.0
    %1330 = vmatprep.subr.mxu0 0.0
    %1331 = vmatpush1.msra.mxu0 0.0
    %1332 = vmatprep.subr.mxu0 0.0
    %1333 = vmatpush1.msra.mxu0 0.0
    %1334 = vmatprep.subr.mxu0 0.0
    %1335 = vmatpush1.msra.mxu0 0.0
    %1336 = vmatprep.subr.mxu0 0.0
    %1337 = vmatpush1.msra.mxu0 0.0
    %1338 = vmatprep.mubr.f32.mxu0 0.0
    %1339 = vmatmul.mubr.f32.gmra.mrb[0].mxu0 %v1272
    %v1340 = vpop.f32.mrb[0].mxu0
    %v1341 = vadd.f32 0.0, %v1340
    %v1342 = vpop.f32.mrb[0].mxu0
    %1343 = vdwg.mxu0
    %v1345 = vsel %vm1270, %v1127, 0
    %1347 = vmatprep.subr.mxu0 0.0
    %1348 = vmatpush1.msra.mxu0 %v1150
    %1349 = vmatprep.subr.mxu0 0.0
    %1350 = vmatpush1.msra.mxu0 %v1151
    %1351 = vmatprep.subr.mxu0 0.0
    %1352 = vmatpush1.msra.mxu0 %v1152
    %1353 = vmatprep.subr.mxu0 0.0
    %1354 = vmatpush1.msra.mxu0 %v1153
    %1355 = vmatprep.subr.mxu0 0.0
    %1356 = vmatpush1.msra.mxu0 %v1154
    %1357 = vmatprep.subr.mxu0 0.0
    %1358 = vmatpush1.msra.mxu0 %v1155
    %1359 = vmatprep.subr.mxu0 0.0
    %1360 = vmatpush1.msra.mxu0 %v1156
    %1361 = vmatprep.subr.mxu0 0.0
    %1362 = vmatpush1.msra.mxu0 %v1157
    %1363 = vmatprep.subr.mxu0 0.0
    %1364 = vmatpush1.msra.mxu0 0.0
    %1365 = vmatprep.subr.mxu0 0.0
    %1366 = vmatpush1.msra.mxu0 0.0
    %1367 = vmatprep.subr.mxu0 0.0
    %1368 = vmatpush1.msra.mxu0 0.0
    %1369 = vmatprep.subr.mxu0 0.0
    %1370 = vmatpush1.msra.mxu0 0.0
    %1371 = vmatprep.subr.mxu0 0.0
    %1372 = vmatpush1.msra.mxu0 0.0
    %1373 = vmatprep.subr.mxu0 0.0
    %1374 = vmatpush1.msra.mxu0 0.0
    %1375 = vmatprep.subr.mxu0 0.0
    %1376 = vmatpush1.msra.mxu0 0.0
    %1377 = vmatprep.subr.mxu0 0.0
    %1378 = vmatpush1.msra.mxu0 0.0
    %1379 = vmatprep.subr.mxu0 0.0
    %1380 = vmatpush1.msra.mxu0 0.0
    %1381 = vmatprep.subr.mxu0 0.0
    %1382 = vmatpush1.msra.mxu0 0.0
    %1383 = vmatprep.subr.mxu0 0.0
    %1384 = vmatpush1.msra.mxu0 0.0
    %1385 = vmatprep.subr.mxu0 0.0
    %1386 = vmatpush1.msra.mxu0 0.0
    %1387 = vmatprep.subr.mxu0 0.0
    %1388 = vmatpush1.msra.mxu0 0.0
    %1389 = vmatprep.subr.mxu0 0.0
    %1390 = vmatpush1.msra.mxu0 0.0
    %1391 = vmatprep.subr.mxu0 0.0
    %1392 = vmatpush1.msra.mxu0 0.0
    %1393 = vmatprep.subr.mxu0 0.0
    %1394 = vmatpush1.msra.mxu0 0.0
    %1395 = vmatprep.subr.mxu0 0.0
    %1396 = vmatpush1.msra.mxu0 0.0
    %1397 = vmatprep.subr.mxu0 0.0
    %1398 = vmatpush1.msra.mxu0 0.0
    %1399 = vmatprep.subr.mxu0 0.0
    %1400 = vmatpush1.msra.mxu0 0.0
    %1401 = vmatprep.subr.mxu0 0.0
    %1402 = vmatpush1.msra.mxu0 0.0
    %1403 = vmatprep.subr.mxu0 0.0
    %1404 = vmatpush1.msra.mxu0 0.0
    %1405 = vmatprep.subr.mxu0 0.0
    %1406 = vmatpush1.msra.mxu0 0.0
    %1407 = vmatprep.subr.mxu0 0.0
    %1408 = vmatpush1.msra.mxu0 0.0
    %1409 = vmatprep.subr.mxu0 0.0
    %1410 = vmatpush1.msra.mxu0 0.0
    %1411 = vmatprep.mubr.f32.mxu0 0.0
    %1412 = vmatmul.mubr.f32.gmra.mrb[0].mxu0 %v1345
    %v1413 = vpop.f32.mrb[0].mxu0
    %v1414 = vadd.f32 0.0, %v1413
    %v1415 = vpop.f32.mrb[0].mxu0
    %1416 = vdwg.mxu0
    %v1418 = vsel %vm1270, %v1128, 0
    %1420 = vmatprep.subr.mxu0 0.0
    %1421 = vmatpush1.msra.mxu0 %v1158
    %1422 = vmatprep.subr.mxu0 0.0
    %1423 = vmatpush1.msra.mxu0 %v1159
    %1424 = vmatprep.subr.mxu0 0.0
    %1425 = vmatpush1.msra.mxu0 %v1160
    %1426 = vmatprep.subr.mxu0 0.0
    %1427 = vmatpush1.msra.mxu0 %v1161
    %1428 = vmatprep.subr.mxu0 0.0
    %1429 = vmatpush1.msra.mxu0 %v1162
    %1430 = vmatprep.subr.mxu0 0.0
    %1431 = vmatpush1.msra.mxu0 %v1163
    %1432 = vmatprep.subr.mxu0 0.0
    %1433 = vmatpush1.msra.mxu0 %v1164
    %1434 = vmatprep.subr.mxu0 0.0
    %1435 = vmatpush1.msra.mxu0 %v1165
    %1436 = vmatprep.subr.mxu0 0.0
    %1437 = vmatpush1.msra.mxu0 0.0
    %1438 = vmatprep.subr.mxu0 0.0
    %1439 = vmatpush1.msra.mxu0 0.0
    %1440 = vmatprep.subr.mxu0 0.0
    %1441 = vmatpush1.msra.mxu0 0.0
    %1442 = vmatprep.subr.mxu0 0.0
    %1443 = vmatpush1.msra.mxu0 0.0
    %1444 = vmatprep.subr.mxu0 0.0
    %1445 = vmatpush1.msra.mxu0 0.0
    %1446 = vmatprep.subr.mxu0 0.0
    %1447 = vmatpush1.msra.mxu0 0.0
    %1448 = vmatprep.subr.mxu0 0.0
    %1449 = vmatpush1.msra.mxu0 0.0
    %1450 = vmatprep.subr.mxu0 0.0
    %1451 = vmatpush1.msra.mxu0 0.0
    %1452 = vmatprep.subr.mxu0 0.0
    %1453 = vmatpush1.msra.mxu0 0.0
    %1454 = vmatprep.subr.mxu0 0.0
    %1455 = vmatpush1.msra.mxu0 0.0
    %1456 = vmatprep.subr.mxu0 0.0
    %1457 = vmatpush1.msra.mxu0 0.0
    %1458 = vmatprep.subr.mxu0 0.0
    %1459 = vmatpush1.msra.mxu0 0.0
    %1460 = vmatprep.subr.mxu0 0.0
    %1461 = vmatpush1.msra.mxu0 0.0
    %1462 = vmatprep.subr.mxu0 0.0
    %1463 = vmatpush1.msra.mxu0 0.0
    %1464 = vmatprep.subr.mxu0 0.0
    %1465 = vmatpush1.msra.mxu0 0.0
    %1466 = vmatprep.subr.mxu0 0.0
    %1467 = vmatpush1.msra.mxu0 0.0
    %1468 = vmatprep.subr.mxu0 0.0
    %1469 = vmatpush1.msra.mxu0 0.0
    %1470 = vmatprep.subr.mxu0 0.0
    %1471 = vmatpush1.msra.mxu0 0.0
    %1472 = vmatprep.subr.mxu0 0.0
    %1473 = vmatpush1.msra.mxu0 0.0
    %1474 = vmatprep.subr.mxu0 0.0
    %1475 = vmatpush1.msra.mxu0 0.0
    %1476 = vmatprep.subr.mxu0 0.0
    %1477 = vmatpush1.msra.mxu0 0.0
    %1478 = vmatprep.subr.mxu0 0.0
    %1479 = vmatpush1.msra.mxu0 0.0
    %1480 = vmatprep.subr.mxu0 0.0
    %1481 = vmatpush1.msra.mxu0 0.0
    %1482 = vmatprep.subr.mxu0 0.0
    %1483 = vmatpush1.msra.mxu0 0.0
    %1484 = vmatprep.mubr.f32.mxu0 0.0
    %1485 = vmatmul.mubr.f32.gmra.mrb[0].mxu0 %v1418
    %v1486 = vpop.f32.mrb[0].mxu0
    %v1487 = vadd.f32 0.0, %v1486
    %v1488 = vpop.f32.mrb[0].mxu0
    %1489 = vdwg.mxu0
    %v1491 = vsel %vm1270, %v1129, 0
    %1493 = vmatprep.subr.mxu0 0.0
    %1494 = vmatpush1.msra.mxu0 %v1166
    %1495 = vmatprep.subr.mxu0 0.0
    %1496 = vmatpush1.msra.mxu0 %v1167
    %1497 = vmatprep.subr.mxu0 0.0
    %1498 = vmatpush1.msra.mxu0 %v1168
    %1499 = vmatprep.subr.mxu0 0.0
    %1500 = vmatpush1.msra.mxu0 %v1169
    %1501 = vmatprep.subr.mxu0 0.0
    %1502 = vmatpush1.msra.mxu0 %v1170
    %1503 = vmatprep.subr.mxu0 0.0
    %1504 = vmatpush1.msra.mxu0 %v1171
    %1505 = vmatprep.subr.mxu0 0.0
    %1506 = vmatpush1.msra.mxu0 %v1172
    %1507 = vmatprep.subr.mxu0 0.0
    %1508 = vmatpush1.msra.mxu0 %v1173
    %1509 = vmatprep.subr.mxu0 0.0
    %1510 = vmatpush1.msra.mxu0 0.0
    %1511 = vmatprep.subr.mxu0 0.0
    %1512 = vmatpush1.msra.mxu0 0.0
    %1513 = vmatprep.subr.mxu0 0.0
    %1514 = vmatpush1.msra.mxu0 0.0
    %1515 = vmatprep.subr.mxu0 0.0
    %1516 = vmatpush1.msra.mxu0 0.0
    %1517 = vmatprep.subr.mxu0 0.0
    %1518 = vmatpush1.msra.mxu0 0.0
    %1519 = vmatprep.subr.mxu0 0.0
    %1520 = vmatpush1.msra.mxu0 0.0
    %1521 = vmatprep.subr.mxu0 0.0
    %1522 = vmatpush1.msra.mxu0 0.0
    %1523 = vmatprep.subr.mxu0 0.0
    %1524 = vmatpush1.msra.mxu0 0.0
    %1525 = vmatprep.subr.mxu0 0.0
    %1526 = vmatpush1.msra.mxu0 0.0
    %1527 = vmatprep.subr.mxu0 0.0
    %1528 = vmatpush1.msra.mxu0 0.0
    %1529 = vmatprep.subr.mxu0 0.0
    %1530 = vmatpush1.msra.mxu0 0.0
    %1531 = vmatprep.subr.mxu0 0.0
    %1532 = vmatpush1.msra.mxu0 0.0
    %1533 = vmatprep.subr.mxu0 0.0
    %1534 = vmatpush1.msra.mxu0 0.0
    %1535 = vmatprep.subr.mxu0 0.0
    %1536 = vmatpush1.msra.mxu0 0.0
    %1537 = vmatprep.subr.mxu0 0.0
    %1538 = vmatpush1.msra.mxu0 0.0
    %1539 = vmatprep.subr.mxu0 0.0
    %1540 = vmatpush1.msra.mxu0 0.0
    %1541 = vmatprep.subr.mxu0 0.0
    %1542 = vmatpush1.msra.mxu0 0.0
    %1543 = vmatprep.subr.mxu0 0.0
    %1544 = vmatpush1.msra.mxu0 0.0
    %1545 = vmatprep.subr.mxu0 0.0
    %1546 = vmatpush1.msra.mxu0 0.0
    %1547 = vmatprep.subr.mxu0 0.0
    %1548 = vmatpush1.msra.mxu0 0.0
    %1549 = vmatprep.subr.mxu0 0.0
    %1550 = vmatpush1.msra.mxu0 0.0
    %1551 = vmatprep.subr.mxu0 0.0
    %1552 = vmatpush1.msra.mxu0 0.0
    %1553 = vmatprep.subr.mxu0 0.0
    %1554 = vmatpush1.msra.mxu0 0.0
    %1555 = vmatprep.subr.mxu0 0.0
    %1556 = vmatpush1.msra.mxu0 0.0
    %1557 = vmatprep.mubr.f32.mxu0 0.0
    %1558 = vmatmul.mubr.f32.gmra.mrb[0].mxu0 %v1491
    %v1559 = vpop.f32.mrb[0].mxu0
    %v1560 = vadd.f32 0.0, %v1559
    %v1561 = vpop.f32.mrb[0].mxu0
    %1562 = vdwg.mxu0
    %v1564 = vsel %vm1270, %v1130, 0
    %1566 = vmatprep.subr.mxu0 0.0
    %1567 = vmatpush1.msra.mxu0 %v1174
    %1568 = vmatprep.subr.mxu0 0.0
    %1569 = vmatpush1.msra.mxu0 %v1175
    %1570 = vmatprep.subr.mxu0 0.0
    %1571 = vmatpush1.msra.mxu0 %v1176
    %1572 = vmatprep.subr.mxu0 0.0
    %1573 = vmatpush1.msra.mxu0 %v1177
    %1574 = vmatprep.subr.mxu0 0.0
    %1575 = vmatpush1.msra.mxu0 %v1178
    %1576 = vmatprep.subr.mxu0 0.0
    %1577 = vmatpush1.msra.mxu0 %v1179
    %1578 = vmatprep.subr.mxu0 0.0
    %1579 = vmatpush1.msra.mxu0 %v1180
    %1580 = vmatprep.subr.mxu0 0.0
    %1581 = vmatpush1.msra.mxu0 %v1181
    %1582 = vmatprep.subr.mxu0 0.0
    %1583 = vmatpush1.msra.mxu0 0.0
    %1584 = vmatprep.subr.mxu0 0.0
    %1585 = vmatpush1.msra.mxu0 0.0
    %1586 = vmatprep.subr.mxu0 0.0
    %1587 = vmatpush1.msra.mxu0 0.0
    %1588 = vmatprep.subr.mxu0 0.0
    %1589 = vmatpush1.msra.mxu0 0.0
    %1590 = vmatprep.subr.mxu0 0.0
    %1591 = vmatpush1.msra.mxu0 0.0
    %1592 = vmatprep.subr.mxu0 0.0
    %1593 = vmatpush1.msra.mxu0 0.0
    %1594 = vmatprep.subr.mxu0 0.0
    %1595 = vmatpush1.msra.mxu0 0.0
    %1596 = vmatprep.subr.mxu0 0.0
    %1597 = vmatpush1.msra.mxu0 0.0
    %1598 = vmatprep.subr.mxu0 0.0
    %1599 = vmatpush1.msra.mxu0 0.0
    %1600 = vmatprep.subr.mxu0 0.0
    %1601 = vmatpush1.msra.mxu0 0.0
    %1602 = vmatprep.subr.mxu0 0.0
    %1603 = vmatpush1.msra.mxu0 0.0
    %1604 = vmatprep.subr.mxu0 0.0
    %1605 = vmatpush1.msra.mxu0 0.0
    %1606 = vmatprep.subr.mxu0 0.0
    %1607 = vmatpush1.msra.mxu0 0.0
    %1608 = vmatprep.subr.mxu0 0.0
    %1609 = vmatpush1.msra.mxu0 0.0
    %1610 = vmatprep.subr.mxu0 0.0
    %1611 = vmatpush1.msra.mxu0 0.0
    %1612 = vmatprep.subr.mxu0 0.0
    %1613 = vmatpush1.msra.mxu0 0.0
    %1614 = vmatprep.subr.mxu0 0.0
    %1615 = vmatpush1.msra.mxu0 0.0
    %1616 = vmatprep.subr.mxu0 0.0
    %1617 = vmatpush1.msra.mxu0 0.0
    %1618 = vmatprep.subr.mxu0 0.0
    %1619 = vmatpush1.msra.mxu0 0.0
    %1620 = vmatprep.subr.mxu0 0.0
    %1621 = vmatpush1.msra.mxu0 0.0
    %1622 = vmatprep.subr.mxu0 0.0
    %1623 = vmatpush1.msra.mxu0 0.0
    %1624 = vmatprep.subr.mxu0 0.0
    %1625 = vmatpush1.msra.mxu0 0.0
    %1626 = vmatprep.subr.mxu0 0.0
    %1627 = vmatpush1.msra.mxu0 0.0
    %1628 = vmatprep.subr.mxu0 0.0
    %1629 = vmatpush1.msra.mxu0 0.0
    %1630 = vmatprep.mubr.f32.mxu0 0.0
    %1631 = vmatmul.mubr.f32.gmra.mrb[0].mxu0 %v1564
    %v1632 = vpop.f32.mrb[0].mxu0
    %v1633 = vadd.f32 0.0, %v1632
    %v1634 = vpop.f32.mrb[0].mxu0
    %1635 = vdwg.mxu0
    %v1637 = vsel %vm1270, %v1131, 0
    %1639 = vmatprep.subr.mxu0 0.0
    %1640 = vmatpush1.msra.mxu0 %v1182
    %1641 = vmatprep.subr.mxu0 0.0
    %1642 = vmatpush1.msra.mxu0 %v1183
    %1643 = vmatprep.subr.mxu0 0.0
    %1644 = vmatpush1.msra.mxu0 %v1184
    %1645 = vmatprep.subr.mxu0 0.0
    %1646 = vmatpush1.msra.mxu0 %v1185
    %1647 = vmatprep.subr.mxu0 0.0
    %1648 = vmatpush1.msra.mxu0 %v1186
    %1649 = vmatprep.subr.mxu0 0.0
    %1650 = vmatpush1.msra.mxu0 %v1187
    %1651 = vmatprep.subr.mxu0 0.0
    %1652 = vmatpush1.msra.mxu0 %v1188
    %1653 = vmatprep.subr.mxu0 0.0
    %1654 = vmatpush1.msra.mxu0 %v1189
    %1655 = vmatprep.subr.mxu0 0.0
    %1656 = vmatpush1.msra.mxu0 0.0
    %1657 = vmatprep.subr.mxu0 0.0
    %1658 = vmatpush1.msra.mxu0 0.0
    %1659 = vmatprep.subr.mxu0 0.0
    %1660 = vmatpush1.msra.mxu0 0.0
    %1661 = vmatprep.subr.mxu0 0.0
    %1662 = vmatpush1.msra.mxu0 0.0
    %1663 = vmatprep.subr.mxu0 0.0
    %1664 = vmatpush1.msra.mxu0 0.0
    %1665 = vmatprep.subr.mxu0 0.0
    %1666 = vmatpush1.msra.mxu0 0.0
    %1667 = vmatprep.subr.mxu0 0.0
    %1668 = vmatpush1.msra.mxu0 0.0
    %1669 = vmatprep.subr.mxu0 0.0
    %1670 = vmatpush1.msra.mxu0 0.0
    %1671 = vmatprep.subr.mxu0 0.0
    %1672 = vmatpush1.msra.mxu0 0.0
    %1673 = vmatprep.subr.mxu0 0.0
    %1674 = vmatpush1.msra.mxu0 0.0
    %1675 = vmatprep.subr.mxu0 0.0
    %1676 = vmatpush1.msra.mxu0 0.0
    %1677 = vmatprep.subr.mxu0 0.0
    %1678 = vmatpush1.msra.mxu0 0.0
    %1679 = vmatprep.subr.mxu0 0.0
    %1680 = vmatpush1.msra.mxu0 0.0
    %1681 = vmatprep.subr.mxu0 0.0
    %1682 = vmatpush1.msra.mxu0 0.0
    %1683 = vmatprep.subr.mxu0 0.0
    %1684 = vmatpush1.msra.mxu0 0.0
    %1685 = vmatprep.subr.mxu0 0.0
    %1686 = vmatpush1.msra.mxu0 0.0
    %1687 = vmatprep.subr.mxu0 0.0
    %1688 = vmatpush1.msra.mxu0 0.0
    %1689 = vmatprep.subr.mxu0 0.0
    %1690 = vmatpush1.msra.mxu0 0.0
    %1691 = vmatprep.subr.mxu0 0.0
    %1692 = vmatpush1.msra.mxu0 0.0
    %1693 = vmatprep.subr.mxu0 0.0
    %1694 = vmatpush1.msra.mxu0 0.0
    %1695 = vmatprep.subr.mxu0 0.0
    %1696 = vmatpush1.msra.mxu0 0.0
    %1697 = vmatprep.subr.mxu0 0.0
    %1698 = vmatpush1.msra.mxu0 0.0
    %1699 = vmatprep.subr.mxu0 0.0
    %1700 = vmatpush1.msra.mxu0 0.0
    %1701 = vmatprep.subr.mxu0 0.0
    %1702 = vmatpush1.msra.mxu0 0.0
    %1703 = vmatprep.mubr.f32.mxu0 0.0
    %1704 = vmatmul.mubr.f32.gmra.mrb[0].mxu0 %v1637
    %v1705 = vpop.f32.mrb[0].mxu0
    %v1706 = vadd.f32 0.0, %v1705
    %v1707 = vpop.f32.mrb[0].mxu0
    %1708 = vdwg.mxu0
    %v1710 = vsel %vm1270, %v1132, 0
    %1712 = vmatprep.subr.mxu0 0.0
    %1713 = vmatpush1.msra.mxu0 %v1190
    %1714 = vmatprep.subr.mxu0 0.0
    %1715 = vmatpush1.msra.mxu0 %v1191
    %1716 = vmatprep.subr.mxu0 0.0
    %1717 = vmatpush1.msra.mxu0 %v1192
    %1718 = vmatprep.subr.mxu0 0.0
    %1719 = vmatpush1.msra.mxu0 %v1193
    %1720 = vmatprep.subr.mxu0 0.0
    %1721 = vmatpush1.msra.mxu0 %v1194
    %1722 = vmatprep.subr.mxu0 0.0
    %1723 = vmatpush1.msra.mxu0 %v1195
    %1724 = vmatprep.subr.mxu0 0.0
    %1725 = vmatpush1.msra.mxu0 %v1196
    %1726 = vmatprep.subr.mxu0 0.0
    %1727 = vmatpush1.msra.mxu0 %v1197
    %1728 = vmatprep.subr.mxu0 0.0
    %1729 = vmatpush1.msra.mxu0 0.0
    %1730 = vmatprep.subr.mxu0 0.0
    %1731 = vmatpush1.msra.mxu0 0.0
    %1732 = vmatprep.subr.mxu0 0.0
    %1733 = vmatpush1.msra.mxu0 0.0
    %1734 = vmatprep.subr.mxu0 0.0
    %1735 = vmatpush1.msra.mxu0 0.0
    %1736 = vmatprep.subr.mxu0 0.0
    %1737 = vmatpush1.msra.mxu0 0.0
    %1738 = vmatprep.subr.mxu0 0.0
    %1739 = vmatpush1.msra.mxu0 0.0
    %1740 = vmatprep.subr.mxu0 0.0
    %1741 = vmatpush1.msra.mxu0 0.0
    %1742 = vmatprep.subr.mxu0 0.0
    %1743 = vmatpush1.msra.mxu0 0.0
    %1744 = vmatprep.subr.mxu0 0.0
    %1745 = vmatpush1.msra.mxu0 0.0
    %1746 = vmatprep.subr.mxu0 0.0
    %1747 = vmatpush1.msra.mxu0 0.0
    %1748 = vmatprep.subr.mxu0 0.0
    %1749 = vmatpush1.msra.mxu0 0.0
    %1750 = vmatprep.subr.mxu0 0.0
    %1751 = vmatpush1.msra.mxu0 0.0
    %1752 = vmatprep.subr.mxu0 0.0
    %1753 = vmatpush1.msra.mxu0 0.0
    %1754 = vmatprep.subr.mxu0 0.0
    %1755 = vmatpush1.msra.mxu0 0.0
    %1756 = vmatprep.subr.mxu0 0.0
    %1757 = vmatpush1.msra.mxu0 0.0
    %1758 = vmatprep.subr.mxu0 0.0
    %1759 = vmatpush1.msra.mxu0 0.0
    %1760 = vmatprep.subr.mxu0 0.0
    %1761 = vmatpush1.msra.mxu0 0.0
    %1762 = vmatprep.subr.mxu0 0.0
    %1763 = vmatpush1.msra.mxu0 0.0
    %1764 = vmatprep.subr.mxu0 0.0
    %1765 = vmatpush1.msra.mxu0 0.0
    %1766 = vmatprep.subr.mxu0 0.0
    %1767 = vmatpush1.msra.mxu0 0.0
    %1768 = vmatprep.subr.mxu0 0.0
    %1769 = vmatpush1.msra.mxu0 0.0
    %1770 = vmatprep.subr.mxu0 0.0
    %1771 = vmatpush1.msra.mxu0 0.0
    %1772 = vmatprep.subr.mxu0 0.0
    %1773 = vmatpush1.msra.mxu0 0.0
    %1774 = vmatprep.subr.mxu0 0.0
    %1775 = vmatpush1.msra.mxu0 0.0
    %1776 = vmatprep.mubr.f32.mxu0 0.0
    %1777 = vmatmul.mubr.f32.gmra.mrb[0].mxu0 %v1710
    %v1778 = vpop.f32.mrb[0].mxu0
    %v1779 = vadd.f32 0.0, %v1778
    %v1780 = vpop.f32.mrb[0].mxu0
    %1781 = vdwg.mxu0
    %v1783 = vsel %vm1270, %v1133, 0
    %1785 = vmatprep.subr.mxu0 0.0
    %1786 = vmatpush1.msra.mxu0 %v1198
    %1787 = vmatprep.subr.mxu0 0.0
    %1788 = vmatpush1.msra.mxu0 %v1199
    %1789 = vmatprep.subr.mxu0 0.0
    %1790 = vmatpush1.msra.mxu0 %v1200
    %1791 = vmatprep.subr.mxu0 0.0
    %1792 = vmatpush1.msra.mxu0 %v1201
    %1793 = vmatprep.subr.mxu0 0.0
    %1794 = vmatpush1.msra.mxu0 %v1202
    %1795 = vmatprep.subr.mxu0 0.0
    %1796 = vmatpush1.msra.mxu0 %v1203
    %1797 = vmatprep.subr.mxu0 0.0
    %1798 = vmatpush1.msra.mxu0 %v1204
    %1799 = vmatprep.subr.mxu0 0.0
    %1800 = vmatpush1.msra.mxu0 %v1205
    %1801 = vmatprep.subr.mxu0 0.0
    %1802 = vmatpush1.msra.mxu0 0.0
    %1803 = vmatprep.subr.mxu0 0.0
    %1804 = vmatpush1.msra.mxu0 0.0
    %1805 = vmatprep.subr.mxu0 0.0
    %1806 = vmatpush1.msra.mxu0 0.0
    %1807 = vmatprep.subr.mxu0 0.0
    %1808 = vmatpush1.msra.mxu0 0.0
    %1809 = vmatprep.subr.mxu0 0.0
    %1810 = vmatpush1.msra.mxu0 0.0
    %1811 = vmatprep.subr.mxu0 0.0
    %1812 = vmatpush1.msra.mxu0 0.0
    %1813 = vmatprep.subr.mxu0 0.0
    %1814 = vmatpush1.msra.mxu0 0.0
    %1815 = vmatprep.subr.mxu0 0.0
    %1816 = vmatpush1.msra.mxu0 0.0
    %1817 = vmatprep.subr.mxu0 0.0
    %1818 = vmatpush1.msra.mxu0 0.0
    %1819 = vmatprep.subr.mxu0 0.0
    %1820 = vmatpush1.msra.mxu0 0.0
    %1821 = vmatprep.subr.mxu0 0.0
    %1822 = vmatpush1.msra.mxu0 0.0
    %1823 = vmatprep.subr.mxu0 0.0
    %1824 = vmatpush1.msra.mxu0 0.0
    %1825 = vmatprep.subr.mxu0 0.0
    %1826 = vmatpush1.msra.mxu0 0.0
    %1827 = vmatprep.subr.mxu0 0.0
    %1828 = vmatpush1.msra.mxu0 0.0
    %1829 = vmatprep.subr.mxu0 0.0
    %1830 = vmatpush1.msra.mxu0 0.0
    %1831 = vmatprep.subr.mxu0 0.0
    %1832 = vmatpush1.msra.mxu0 0.0
    %1833 = vmatprep.subr.mxu0 0.0
    %1834 = vmatpush1.msra.mxu0 0.0
    %1835 = vmatprep.subr.mxu0 0.0
    %1836 = vmatpush1.msra.mxu0 0.0
    %1837 = vmatprep.subr.mxu0 0.0
    %1838 = vmatpush1.msra.mxu0 0.0
    %1839 = vmatprep.subr.mxu0 0.0
    %1840 = vmatpush1.msra.mxu0 0.0
    %1841 = vmatprep.subr.mxu0 0.0
    %1842 = vmatpush1.msra.mxu0 0.0
    %1843 = vmatprep.subr.mxu0 0.0
    %1844 = vmatpush1.msra.mxu0 0.0
    %1845 = vmatprep.subr.mxu0 0.0
    %1846 = vmatpush1.msra.mxu0 0.0
    %1847 = vmatprep.subr.mxu0 0.0
    %1848 = vmatpush1.msra.mxu0 0.0
    %1849 = vmatprep.mubr.f32.mxu0 0.0
    %1850 = vmatmul.mubr.f32.gmra.mrb[0].mxu0 %v1783
    %v1851 = vpop.f32.mrb[0].mxu0
    %v1852 = vadd.f32 0.0, %v1851
    %v1853 = vpop.f32.mrb[0].mxu0
    %1854 = vdwg.mxu0
    %v1856 = vsel %vm1270, %v1134, 0
    %1858 = vmatprep.subr.mxu0 0.0
    %1859 = vmatpush1.msra.mxu0 %v1206
    %1860 = vmatprep.subr.mxu0 0.0
    %1861 = vmatpush1.msra.mxu0 %v1207
    %1862 = vmatprep.subr.mxu0 0.0
    %1863 = vmatpush1.msra.mxu0 %v1208
    %1864 = vmatprep.subr.mxu0 0.0
    %1865 = vmatpush1.msra.mxu0 %v1209
    %1866 = vmatprep.subr.mxu0 0.0
    %1867 = vmatpush1.msra.mxu0 %v1210
    %1868 = vmatprep.subr.mxu0 0.0
    %1869 = vmatpush1.msra.mxu0 %v1211
    %1870 = vmatprep.subr.mxu0 0.0
    %1871 = vmatpush1.msra.mxu0 %v1212
    %1872 = vmatprep.subr.mxu0 0.0
    %1873 = vmatpush1.msra.mxu0 %v1213
    %1874 = vmatprep.subr.mxu0 0.0
    %1875 = vmatpush1.msra.mxu0 0.0
    %1876 = vmatprep.subr.mxu0 0.0
    %1877 = vmatpush1.msra.mxu0 0.0
    %1878 = vmatprep.subr.mxu0 0.0
    %1879 = vmatpush1.msra.mxu0 0.0
    %1880 = vmatprep.subr.mxu0 0.0
    %1881 = vmatpush1.msra.mxu0 0.0
    %1882 = vmatprep.subr.mxu0 0.0
    %1883 = vmatpush1.msra.mxu0 0.0
    %1884 = vmatprep.subr.mxu0 0.0
    %1885 = vmatpush1.msra.mxu0 0.0
    %1886 = vmatprep.subr.mxu0 0.0
    %1887 = vmatpush1.msra.mxu0 0.0
    %1888 = vmatprep.subr.mxu0 0.0
    %1889 = vmatpush1.msra.mxu0 0.0
    %1890 = vmatprep.subr.mxu0 0.0
    %1891 = vmatpush1.msra.mxu0 0.0
    %1892 = vmatprep.subr.mxu0 0.0
    %1893 = vmatpush1.msra.mxu0 0.0
    %1894 = vmatprep.subr.mxu0 0.0
    %1895 = vmatpush1.msra.mxu0 0.0
    %1896 = vmatprep.subr.mxu0 0.0
    %1897 = vmatpush1.msra.mxu0 0.0
    %1898 = vmatprep.subr.mxu0 0.0
    %1899 = vmatpush1.msra.mxu0 0.0
    %1900 = vmatprep.subr.mxu0 0.0
    %1901 = vmatpush1.msra.mxu0 0.0
    %1902 = vmatprep.subr.mxu0 0.0
    %1903 = vmatpush1.msra.mxu0 0.0
    %1904 = vmatprep.subr.mxu0 0.0
    %1905 = vmatpush1.msra.mxu0 0.0
    %1906 = vmatprep.subr.mxu0 0.0
    %1907 = vmatpush1.msra.mxu0 0.0
    %1908 = vmatprep.subr.mxu0 0.0
    %1909 = vmatpush1.msra.mxu0 0.0
    %1910 = vmatprep.subr.mxu0 0.0
    %1911 = vmatpush1.msra.mxu0 0.0
    %1912 = vmatprep.subr.mxu0 0.0
    %1913 = vmatpush1.msra.mxu0 0.0
    %1914 = vmatprep.subr.mxu0 0.0
    %1915 = vmatpush1.msra.mxu0 0.0
    %1916 = vmatprep.subr.mxu0 0.0
    %1917 = vmatpush1.msra.mxu0 0.0
    %1918 = vmatprep.subr.mxu0 0.0
    %1919 = vmatpush1.msra.mxu0 0.0
    %1920 = vmatprep.subr.mxu0 0.0
    %1921 = vmatpush1.msra.mxu0 0.0
    %1922 = vmatprep.mubr.f32.mxu0 0.0
    %1923 = vmatmul.mubr.f32.gmra.mrb[0].mxu0 %v1856
    %v1924 = vpop.f32.mrb[0].mxu0
    %v1925 = vadd.f32 0.0, %v1924
    %v1926 = vpop.f32.mrb[0].mxu0
    %1927 = vdwg.mxu0
    %v1929 = vsel %vm1270, %v1135, 0
    %1931 = vmatprep.subr.mxu0 0.0
    %1932 = vmatpush1.msra.mxu0 %v1214
    %1933 = vmatprep.subr.mxu0 0.0
    %1934 = vmatpush1.msra.mxu0 %v1215
    %1935 = vmatprep.subr.mxu0 0.0
    %1936 = vmatpush1.msra.mxu0 %v1216
    %1937 = vmatprep.subr.mxu0 0.0
    %1938 = vmatpush1.msra.mxu0 %v1217
    %1939 = vmatprep.subr.mxu0 0.0
    %1940 = vmatpush1.msra.mxu0 %v1218
    %1941 = vmatprep.subr.mxu0 0.0
    %1942 = vmatpush1.msra.mxu0 %v1219
    %1943 = vmatprep.subr.mxu0 0.0
    %1944 = vmatpush1.msra.mxu0 %v1220
    %1945 = vmatprep.subr.mxu0 0.0
    %1946 = vmatpush1.msra.mxu0 %v1221
    %1947 = vmatprep.subr.mxu0 0.0
    %1948 = vmatpush1.msra.mxu0 0.0
    %1949 = vmatprep.subr.mxu0 0.0
    %1950 = vmatpush1.msra.mxu0 0.0
    %1951 = vmatprep.subr.mxu0 0.0
    %1952 = vmatpush1.msra.mxu0 0.0
    %1953 = vmatprep.subr.mxu0 0.0
    %1954 = vmatpush1.msra.mxu0 0.0
    %1955 = vmatprep.subr.mxu0 0.0
    %1956 = vmatpush1.msra.mxu0 0.0
    %1957 = vmatprep.subr.mxu0 0.0
    %1958 = vmatpush1.msra.mxu0 0.0
    %1959 = vmatprep.subr.mxu0 0.0
    %1960 = vmatpush1.msra.mxu0 0.0
    %1961 = vmatprep.subr.mxu0 0.0
    %1962 = vmatpush1.msra.mxu0 0.0
    %1963 = vmatprep.subr.mxu0 0.0
    %1964 = vmatpush1.msra.mxu0 0.0
    %1965 = vmatprep.subr.mxu0 0.0
    %1966 = vmatpush1.msra.mxu0 0.0
    %1967 = vmatprep.subr.mxu0 0.0
    %1968 = vmatpush1.msra.mxu0 0.0
    %1969 = vmatprep.subr.mxu0 0.0
    %1970 = vmatpush1.msra.mxu0 0.0
    %1971 = vmatprep.subr.mxu0 0.0
    %1972 = vmatpush1.msra.mxu0 0.0
    %1973 = vmatprep.subr.mxu0 0.0
    %1974 = vmatpush1.msra.mxu0 0.0
    %1975 = vmatprep.subr.mxu0 0.0
    %1976 = vmatpush1.msra.mxu0 0.0
    %1977 = vmatprep.subr.mxu0 0.0
    %1978 = vmatpush1.msra.mxu0 0.0
    %1979 = vmatprep.subr.mxu0 0.0
    %1980 = vmatpush1.msra.mxu0 0.0
    %1981 = vmatprep.subr.mxu0 0.0
    %1982 = vmatpush1.msra.mxu0 0.0
    %1983 = vmatprep.subr.mxu0 0.0
    %1984 = vmatpush1.msra.mxu0 0.0
    %1985 = vmatprep.subr.mxu0 0.0
    %1986 = vmatpush1.msra.mxu0 0.0
    %1987 = vmatprep.subr.mxu0 0.0
    %1988 = vmatpush1.msra.mxu0 0.0
    %1989 = vmatprep.subr.mxu0 0.0
    %1990 = vmatpush1.msra.mxu0 0.0
    %1991 = vmatprep.subr.mxu0 0.0
    %1992 = vmatpush1.msra.mxu0 0.0
    %1993 = vmatprep.subr.mxu0 0.0
    %1994 = vmatpush1.msra.mxu0 0.0
    %1995 = vmatprep.mubr.f32.mxu0 0.0
    %1996 = vmatmul.mubr.f32.gmra.mrb[0].mxu0 %v1929
    %v1997 = vpop.f32.mrb[0].mxu0
    %v1998 = vadd.f32 0.0, %v1997
    %v1999 = vpop.f32.mrb[0].mxu0
    %2000 = vdwg.mxu0
    %v2002 = vsel %vm1270, %v1136, 0
    %2004 = vmatprep.subr.mxu0 0.0
    %2005 = vmatpush1.msra.mxu0 %v1222
    %2006 = vmatprep.subr.mxu0 0.0
    %2007 = vmatpush1.msra.mxu0 %v1223
    %2008 = vmatprep.subr.mxu0 0.0
    %2009 = vmatpush1.msra.mxu0 %v1224
    %2010 = vmatprep.subr.mxu0 0.0
    %2011 = vmatpush1.msra.mxu0 %v1225
    %2012 = vmatprep.subr.mxu0 0.0
    %2013 = vmatpush1.msra.mxu0 %v1226
    %2014 = vmatprep.subr.mxu0 0.0
    %2015 = vmatpush1.msra.mxu0 %v1227
    %2016 = vmatprep.subr.mxu0 0.0
    %2017 = vmatpush1.msra.mxu0 %v1228
    %2018 = vmatprep.subr.mxu0 0.0
    %2019 = vmatpush1.msra.mxu0 %v1229
    %2020 = vmatprep.subr.mxu0 0.0
    %2021 = vmatpush1.msra.mxu0 0.0
    %2022 = vmatprep.subr.mxu0 0.0
    %2023 = vmatpush1.msra.mxu0 0.0
    %2024 = vmatprep.subr.mxu0 0.0
    %2025 = vmatpush1.msra.mxu0 0.0
    %2026 = vmatprep.subr.mxu0 0.0
    %2027 = vmatpush1.msra.mxu0 0.0
    %2028 = vmatprep.subr.mxu0 0.0
    %2029 = vmatpush1.msra.mxu0 0.0
    %2030 = vmatprep.subr.mxu0 0.0
    %2031 = vmatpush1.msra.mxu0 0.0
    %2032 = vmatprep.subr.mxu0 0.0
    %2033 = vmatpush1.msra.mxu0 0.0
    %2034 = vmatprep.subr.mxu0 0.0
    %2035 = vmatpush1.msra.mxu0 0.0
    %2036 = vmatprep.subr.mxu0 0.0
    %2037 = vmatpush1.msra.mxu0 0.0
    %2038 = vmatprep.subr.mxu0 0.0
    %2039 = vmatpush1.msra.mxu0 0.0
    %2040 = vmatprep.subr.mxu0 0.0
    %2041 = vmatpush1.msra.mxu0 0.0
    %2042 = vmatprep.subr.mxu0 0.0
    %2043 = vmatpush1.msra.mxu0 0.0
    %2044 = vmatprep.subr.mxu0 0.0
    %2045 = vmatpush1.msra.mxu0 0.0
    %2046 = vmatprep.subr.mxu0 0.0
    %2047 = vmatpush1.msra.mxu0 0.0
    %2048 = vmatprep.subr.mxu0 0.0
    %2049 = vmatpush1.msra.mxu0 0.0
    %2050 = vmatprep.subr.mxu0 0.0
    %2051 = vmatpush1.msra.mxu0 0.0
    %2052 = vmatprep.subr.mxu0 0.0
    %2053 = vmatpush1.msra.mxu0 0.0
    %2054 = vmatprep.subr.mxu0 0.0
    %2055 = vmatpush1.msra.mxu0 0.0
    %2056 = vmatprep.subr.mxu0 0.0
    %2057 = vmatpush1.msra.mxu0 0.0
    %2058 = vmatprep.subr.mxu0 0.0
    %2059 = vmatpush1.msra.mxu0 0.0
    %2060 = vmatprep.subr.mxu0 0.0
    %2061 = vmatpush1.msra.mxu0 0.0
    %2062 = vmatprep.subr.mxu0 0.0
    %2063 = vmatpush1.msra.mxu0 0.0
    %2064 = vmatprep.subr.mxu0 0.0
    %2065 = vmatpush1.msra.mxu0 0.0
    %2066 = vmatprep.subr.mxu0 0.0
    %2067 = vmatpush1.msra.mxu0 0.0
    %2068 = vmatprep.mubr.f32.mxu0 0.0
    %2069 = vmatmul.mubr.f32.gmra.mrb[0].mxu0 %v2002
    %v2070 = vpop.f32.mrb[0].mxu0
    %v2071 = vadd.f32 0.0, %v2070
    %v2072 = vpop.f32.mrb[0].mxu0
    %2073 = vdwg.mxu0
    %v2075 = vsel %vm1270, %v1137, 0
    %2077 = vmatprep.subr.mxu0 0.0
    %2078 = vmatpush1.msra.mxu0 %v1230
    %2079 = vmatprep.subr.mxu0 0.0
    %2080 = vmatpush1.msra.mxu0 %v1231
    %2081 = vmatprep.subr.mxu0 0.0
    %2082 = vmatpush1.msra.mxu0 %v1232
    %2083 = vmatprep.subr.mxu0 0.0
    %2084 = vmatpush1.msra.mxu0 %v1233
    %2085 = vmatprep.subr.mxu0 0.0
    %2086 = vmatpush1.msra.mxu0 %v1234
    %2087 = vmatprep.subr.mxu0 0.0
    %2088 = vmatpush1.msra.mxu0 %v1235
    %2089 = vmatprep.subr.mxu0 0.0
    %2090 = vmatpush1.msra.mxu0 %v1236
    %2091 = vmatprep.subr.mxu0 0.0
    %2092 = vmatpush1.msra.mxu0 %v1237
    %2093 = vmatprep.subr.mxu0 0.0
    %2094 = vmatpush1.msra.mxu0 0.0
    %2095 = vmatprep.subr.mxu0 0.0
    %2096 = vmatpush1.msra.mxu0 0.0
    %2097 = vmatprep.subr.mxu0 0.0
    %2098 = vmatpush1.msra.mxu0 0.0
    %2099 = vmatprep.subr.mxu0 0.0
    %2100 = vmatpush1.msra.mxu0 0.0
    %2101 = vmatprep.subr.mxu0 0.0
    %2102 = vmatpush1.msra.mxu0 0.0
    %2103 = vmatprep.subr.mxu0 0.0
    %2104 = vmatpush1.msra.mxu0 0.0
    %2105 = vmatprep.subr.mxu0 0.0
    %2106 = vmatpush1.msra.mxu0 0.0
    %2107 = vmatprep.subr.mxu0 0.0
    %2108 = vmatpush1.msra.mxu0 0.0
    %2109 = vmatprep.subr.mxu0 0.0
    %2110 = vmatpush1.msra.mxu0 0.0
    %2111 = vmatprep.subr.mxu0 0.0
    %2112 = vmatpush1.msra.mxu0 0.0
    %2113 = vmatprep.subr.mxu0 0.0
    %2114 = vmatpush1.msra.mxu0 0.0
    %2115 = vmatprep.subr.mxu0 0.0
    %2116 = vmatpush1.msra.mxu0 0.0
    %2117 = vmatprep.subr.mxu0 0.0
    %2118 = vmatpush1.msra.mxu0 0.0
    %2119 = vmatprep.subr.mxu0 0.0
    %2120 = vmatpush1.msra.mxu0 0.0
    %2121 = vmatprep.subr.mxu0 0.0
    %2122 = vmatpush1.msra.mxu0 0.0
    %2123 = vmatprep.subr.mxu0 0.0
    %2124 = vmatpush1.msra.mxu0 0.0
    %2125 = vmatprep.subr.mxu0 0.0
    %2126 = vmatpush1.msra.mxu0 0.0
    %2127 = vmatprep.subr.mxu0 0.0
    %2128 = vmatpush1.msra.mxu0 0.0
    %2129 = vmatprep.subr.mxu0 0.0
    %2130 = vmatpush1.msra.mxu0 0.0
    %2131 = vmatprep.subr.mxu0 0.0
    %2132 = vmatpush1.msra.mxu0 0.0
    %2133 = vmatprep.subr.mxu0 0.0
    %2134 = vmatpush1.msra.mxu0 0.0
    %2135 = vmatprep.subr.mxu0 0.0
    %2136 = vmatpush1.msra.mxu0 0.0
    %2137 = vmatprep.subr.mxu0 0.0
    %2138 = vmatpush1.msra.mxu0 0.0
    %2139 = vmatprep.subr.mxu0 0.0
    %2140 = vmatpush1.msra.mxu0 0.0
    %2141 = vmatprep.mubr.f32.mxu0 0.0
    %2142 = vmatmul.mubr.f32.gmra.mrb[0].mxu0 %v2075
    %v2143 = vpop.f32.mrb[0].mxu0
    %v2144 = vadd.f32 0.0, %v2143
    %v2145 = vpop.f32.mrb[0].mxu0
    %2146 = vdwg.mxu0
    %v2148 = vsel %vm1270, %v1138, 0
    %2150 = vmatprep.subr.mxu0 0.0
    %2151 = vmatpush1.msra.mxu0 %v1238
    %2152 = vmatprep.subr.mxu0 0.0
    %2153 = vmatpush1.msra.mxu0 %v1239
    %2154 = vmatprep.subr.mxu0 0.0
    %2155 = vmatpush1.msra.mxu0 %v1240
    %2156 = vmatprep.subr.mxu0 0.0
    %2157 = vmatpush1.msra.mxu0 %v1241
    %2158 = vmatprep.subr.mxu0 0.0
    %2159 = vmatpush1.msra.mxu0 %v1242
    %2160 = vmatprep.subr.mxu0 0.0
    %2161 = vmatpush1.msra.mxu0 %v1243
    %2162 = vmatprep.subr.mxu0 0.0
    %2163 = vmatpush1.msra.mxu0 %v1244
    %2164 = vmatprep.subr.mxu0 0.0
    %2165 = vmatpush1.msra.mxu0 %v1245
    %2166 = vmatprep.subr.mxu0 0.0
    %2167 = vmatpush1.msra.mxu0 0.0
    %2168 = vmatprep.subr.mxu0 0.0
    %2169 = vmatpush1.msra.mxu0 0.0
    %2170 = vmatprep.subr.mxu0 0.0
    %2171 = vmatpush1.msra.mxu0 0.0
    %2172 = vmatprep.subr.mxu0 0.0
    %2173 = vmatpush1.msra.mxu0 0.0
    %2174 = vmatprep.subr.mxu0 0.0
    %2175 = vmatpush1.msra.mxu0 0.0
    %2176 = vmatprep.subr.mxu0 0.0
    %2177 = vmatpush1.msra.mxu0 0.0
    %2178 = vmatprep.subr.mxu0 0.0
    %2179 = vmatpush1.msra.mxu0 0.0
    %2180 = vmatprep.subr.mxu0 0.0
    %2181 = vmatpush1.msra.mxu0 0.0
    %2182 = vmatprep.subr.mxu0 0.0
    %2183 = vmatpush1.msra.mxu0 0.0
    %2184 = vmatprep.subr.mxu0 0.0
    %2185 = vmatpush1.msra.mxu0 0.0
    %2186 = vmatprep.subr.mxu0 0.0
    %2187 = vmatpush1.msra.mxu0 0.0
    %2188 = vmatprep.subr.mxu0 0.0
    %2189 = vmatpush1.msra.mxu0 0.0
    %2190 = vmatprep.subr.mxu0 0.0
    %2191 = vmatpush1.msra.mxu0 0.0
    %2192 = vmatprep.subr.mxu0 0.0
    %2193 = vmatpush1.msra.mxu0 0.0
    %2194 = vmatprep.subr.mxu0 0.0
    %2195 = vmatpush1.msra.mxu0 0.0
    %2196 = vmatprep.subr.mxu0 0.0
    %2197 = vmatpush1.msra.mxu0 0.0
    %2198 = vmatprep.subr.mxu0 0.0
    %2199 = vmatpush1.msra.mxu0 0.0
    %2200 = vmatprep.subr.mxu0 0.0
    %2201 = vmatpush1.msra.mxu0 0.0
    %2202 = vmatprep.subr.mxu0 0.0
    %2203 = vmatpush1.msra.mxu0 0.0
    %2204 = vmatprep.subr.mxu0 0.0
    %2205 = vmatpush1.msra.mxu0 0.0
    %2206 = vmatprep.subr.mxu0 0.0
    %2207 = vmatpush1.msra.mxu0 0.0
    %2208 = vmatprep.subr.mxu0 0.0
    %2209 = vmatpush1.msra.mxu0 0.0
    %2210 = vmatprep.subr.mxu0 0.0
    %2211 = vmatpush1.msra.mxu0 0.0
    %2212 = vmatprep.subr.mxu0 0.0
    %2213 = vmatpush1.msra.mxu0 0.0
    %2214 = vmatprep.mubr.f32.mxu0 0.0
    %2215 = vmatmul.mubr.f32.gmra.mrb[0].mxu0 %v2148
    %v2216 = vpop.f32.mrb[0].mxu0
    %v2217 = vadd.f32 0.0, %v2216
    %v2218 = vpop.f32.mrb[0].mxu0
    %2219 = vdwg.mxu0
    %v2221 = vsel %vm1270, %v1139, 0
    %2223 = vmatprep.subr.mxu0 0.0
    %2224 = vmatpush1.msra.mxu0 %v1246
    %2225 = vmatprep.subr.mxu0 0.0
    %2226 = vmatpush1.msra.mxu0 %v1247
    %2227 = vmatprep.subr.mxu0 0.0
    %2228 = vmatpush1.msra.mxu0 %v1248
    %2229 = vmatprep.subr.mxu0 0.0
    %2230 = vmatpush1.msra.mxu0 %v1249
    %2231 = vmatprep.subr.mxu0 0.0
    %2232 = vmatpush1.msra.mxu0 %v1250
    %2233 = vmatprep.subr.mxu0 0.0
    %2234 = vmatpush1.msra.mxu0 %v1251
    %2235 = vmatprep.subr.mxu0 0.0
    %2236 = vmatpush1.msra.mxu0 %v1252
    %2237 = vmatprep.subr.mxu0 0.0
    %2238 = vmatpush1.msra.mxu0 %v1253
    %2239 = vmatprep.subr.mxu0 0.0
    %2240 = vmatpush1.msra.mxu0 0.0
    %2241 = vmatprep.subr.mxu0 0.0
    %2242 = vmatpush1.msra.mxu0 0.0
    %2243 = vmatprep.subr.mxu0 0.0
    %2244 = vmatpush1.msra.mxu0 0.0
    %2245 = vmatprep.subr.mxu0 0.0
    %2246 = vmatpush1.msra.mxu0 0.0
    %2247 = vmatprep.subr.mxu0 0.0
    %2248 = vmatpush1.msra.mxu0 0.0
    %2249 = vmatprep.subr.mxu0 0.0
    %2250 = vmatpush1.msra.mxu0 0.0
    %2251 = vmatprep.subr.mxu0 0.0
    %2252 = vmatpush1.msra.mxu0 0.0
    %2253 = vmatprep.subr.mxu0 0.0
    %2254 = vmatpush1.msra.mxu0 0.0
    %2255 = vmatprep.subr.mxu0 0.0
    %2256 = vmatpush1.msra.mxu0 0.0
    %2257 = vmatprep.subr.mxu0 0.0
    %2258 = vmatpush1.msra.mxu0 0.0
    %2259 = vmatprep.subr.mxu0 0.0
    %2260 = vmatpush1.msra.mxu0 0.0
    %2261 = vmatprep.subr.mxu0 0.0
    %2262 = vmatpush1.msra.mxu0 0.0
    %2263 = vmatprep.subr.mxu0 0.0
    %2264 = vmatpush1.msra.mxu0 0.0
    %2265 = vmatprep.subr.mxu0 0.0
    %2266 = vmatpush1.msra.mxu0 0.0
    %2267 = vmatprep.subr.mxu0 0.0
    %2268 = vmatpush1.msra.mxu0 0.0
    %2269 = vmatprep.subr.mxu0 0.0
    %2270 = vmatpush1.msra.mxu0 0.0
    %2271 = vmatprep.subr.mxu0 0.0
    %2272 = vmatpush1.msra.mxu0 0.0
    %2273 = vmatprep.subr.mxu0 0.0
    %2274 = vmatpush1.msra.mxu0 0.0
    %2275 = vmatprep.subr.mxu0 0.0
    %2276 = vmatpush1.msra.mxu0 0.0
    %2277 = vmatprep.subr.mxu0 0.0
    %2278 = vmatpush1.msra.mxu0 0.0
    %2279 = vmatprep.subr.mxu0 0.0
    %2280 = vmatpush1.msra.mxu0 0.0
    %2281 = vmatprep.subr.mxu0 0.0
    %2282 = vmatpush1.msra.mxu0 0.0
    %2283 = vmatprep.subr.mxu0 0.0
    %2284 = vmatpush1.msra.mxu0 0.0
    %2285 = vmatprep.subr.mxu0 0.0
    %2286 = vmatpush1.msra.mxu0 0.0
    %2287 = vmatprep.mubr.f32.mxu0 0.0
    %2288 = vmatmul.mubr.f32.gmra.mrb[0].mxu0 %v2221
    %v2289 = vpop.f32.mrb[0].mxu0
    %v2290 = vadd.f32 0.0, %v2289
    %v2291 = vpop.f32.mrb[0].mxu0
    %2292 = vdwg.mxu0
    %v2294 = vsel %vm1270, %v1140, 0
    %2296 = vmatprep.subr.mxu0 0.0
    %2297 = vmatpush1.msra.mxu0 %v1254
    %2298 = vmatprep.subr.mxu0 0.0
    %2299 = vmatpush1.msra.mxu0 %v1255
    %2300 = vmatprep.subr.mxu0 0.0
    %2301 = vmatpush1.msra.mxu0 %v1256
    %2302 = vmatprep.subr.mxu0 0.0
    %2303 = vmatpush1.msra.mxu0 %v1257
    %2304 = vmatprep.subr.mxu0 0.0
    %2305 = vmatpush1.msra.mxu0 %v1258
    %2306 = vmatprep.subr.mxu0 0.0
    %2307 = vmatpush1.msra.mxu0 %v1259
    %2308 = vmatprep.subr.mxu0 0.0
    %2309 = vmatpush1.msra.mxu0 %v1260
    %2310 = vmatprep.subr.mxu0 0.0
    %2311 = vmatpush1.msra.mxu0 %v1261
    %2312 = vmatprep.subr.mxu0 0.0
    %2313 = vmatpush1.msra.mxu0 0.0
    %2314 = vmatprep.subr.mxu0 0.0
    %2315 = vmatpush1.msra.mxu0 0.0
    %2316 = vmatprep.subr.mxu0 0.0
    %2317 = vmatpush1.msra.mxu0 0.0
    %2318 = vmatprep.subr.mxu0 0.0
    %2319 = vmatpush1.msra.mxu0 0.0
    %2320 = vmatprep.subr.mxu0 0.0
    %2321 = vmatpush1.msra.mxu0 0.0
    %2322 = vmatprep.subr.mxu0 0.0
    %2323 = vmatpush1.msra.mxu0 0.0
    %2324 = vmatprep.subr.mxu0 0.0
    %2325 = vmatpush1.msra.mxu0 0.0
    %2326 = vmatprep.subr.mxu0 0.0
    %2327 = vmatpush1.msra.mxu0 0.0
    %2328 = vmatprep.subr.mxu0 0.0
    %2329 = vmatpush1.msra.mxu0 0.0
    %2330 = vmatprep.subr.mxu0 0.0
    %2331 = vmatpush1.msra.mxu0 0.0
    %2332 = vmatprep.subr.mxu0 0.0
    %2333 = vmatpush1.msra.mxu0 0.0
    %2334 = vmatprep.subr.mxu0 0.0
    %2335 = vmatpush1.msra.mxu0 0.0
    %2336 = vmatprep.subr.mxu0 0.0
    %2337 = vmatpush1.msra.mxu0 0.0
    %2338 = vmatprep.subr.mxu0 0.0
    %2339 = vmatpush1.msra.mxu0 0.0
    %2340 = vmatprep.subr.mxu0 0.0
    %2341 = vmatpush1.msra.mxu0 0.0
    %2342 = vmatprep.subr.mxu0 0.0
    %2343 = vmatpush1.msra.mxu0 0.0
    %2344 = vmatprep.subr.mxu0 0.0
    %2345 = vmatpush1.msra.mxu0 0.0
    %2346 = vmatprep.subr.mxu0 0.0
    %2347 = vmatpush1.msra.mxu0 0.0
    %2348 = vmatprep.subr.mxu0 0.0
    %2349 = vmatpush1.msra.mxu0 0.0
    %2350 = vmatprep.subr.mxu0 0.0
    %2351 = vmatpush1.msra.mxu0 0.0
    %2352 = vmatprep.subr.mxu0 0.0
    %2353 = vmatpush1.msra.mxu0 0.0
    %2354 = vmatprep.subr.mxu0 0.0
    %2355 = vmatpush1.msra.mxu0 0.0
    %2356 = vmatprep.subr.mxu0 0.0
    %2357 = vmatpush1.msra.mxu0 0.0
    %2358 = vmatprep.subr.mxu0 0.0
    %2359 = vmatpush1.msra.mxu0 0.0
    %2360 = vmatprep.mubr.f32.mxu0 0.0
    %2361 = vmatmul.mubr.f32.gmra.mrb[0].mxu0 %v2294
    %v2362 = vpop.f32.mrb[0].mxu0
    %v2363 = vadd.f32 0.0, %v2362
    %v2364 = vpop.f32.mrb[0].mxu0
    %2365 = vdwg.mxu0
    %v2367 = vsel %vm1270, %v1141, 0
    %2369 = vmatprep.subr.mxu0 0.0
    %2370 = vmatpush1.msra.mxu0 %v1262
    %2371 = vmatprep.subr.mxu0 0.0
    %2372 = vmatpush1.msra.mxu0 %v1263
    %2373 = vmatprep.subr.mxu0 0.0
    %2374 = vmatpush1.msra.mxu0 %v1264
    %2375 = vmatprep.subr.mxu0 0.0
    %2376 = vmatpush1.msra.mxu0 %v1265
    %2377 = vmatprep.subr.mxu0 0.0
    %2378 = vmatpush1.msra.mxu0 %v1266
    %2379 = vmatprep.subr.mxu0 0.0
    %2380 = vmatpush1.msra.mxu0 %v1267
    %2381 = vmatprep.subr.mxu0 0.0
    %2382 = vmatpush1.msra.mxu0 %v1268
    %2383 = vmatprep.subr.mxu0 0.0
    %2384 = vmatpush1.msra.mxu0 %v1269
    %2385 = vmatprep.subr.mxu0 0.0
    %2386 = vmatpush1.msra.mxu0 0.0
    %2387 = vmatprep.subr.mxu0 0.0
    %2388 = vmatpush1.msra.mxu0 0.0
    %2389 = vmatprep.subr.mxu0 0.0
    %2390 = vmatpush1.msra.mxu0 0.0
    %2391 = vmatprep.subr.mxu0 0.0
    %2392 = vmatpush1.msra.mxu0 0.0
    %2393 = vmatprep.subr.mxu0 0.0
    %2394 = vmatpush1.msra.mxu0 0.0
    %2395 = vmatprep.subr.mxu0 0.0
    %2396 = vmatpush1.msra.mxu0 0.0
    %2397 = vmatprep.subr.mxu0 0.0
    %2398 = vmatpush1.msra.mxu0 0.0
    %2399 = vmatprep.subr.mxu0 0.0
    %2400 = vmatpush1.msra.mxu0 0.0
    %2401 = vmatprep.subr.mxu0 0.0
    %2402 = vmatpush1.msra.mxu0 0.0
    %2403 = vmatprep.subr.mxu0 0.0
    %2404 = vmatpush1.msra.mxu0 0.0
    %2405 = vmatprep.subr.mxu0 0.0
    %2406 = vmatpush1.msra.mxu0 0.0
    %2407 = vmatprep.subr.mxu0 0.0
    %2408 = vmatpush1.msra.mxu0 0.0
    %2409 = vmatprep.subr.mxu0 0.0
    %2410 = vmatpush1.msra.mxu0 0.0
    %2411 = vmatprep.subr.mxu0 0.0
    %2412 = vmatpush1.msra.mxu0 0.0
    %2413 = vmatprep.subr.mxu0 0.0
    %2414 = vmatpush1.msra.mxu0 0.0
    %2415 = vmatprep.subr.mxu0 0.0
    %2416 = vmatpush1.msra.mxu0 0.0
    %2417 = vmatprep.subr.mxu0 0.0
    %2418 = vmatpush1.msra.mxu0 0.0
    %2419 = vmatprep.subr.mxu0 0.0
    %2420 = vmatpush1.msra.mxu0 0.0
    %2421 = vmatprep.subr.mxu0 0.0
    %2422 = vmatpush1.msra.mxu0 0.0
    %2423 = vmatprep.subr.mxu0 0.0
    %2424 = vmatpush1.msra.mxu0 0.0
    %2425 = vmatprep.subr.mxu0 0.0
    %2426 = vmatpush1.msra.mxu0 0.0
    %2427 = vmatprep.subr.mxu0 0.0
    %2428 = vmatpush1.msra.mxu0 0.0
    %2429 = vmatprep.subr.mxu0 0.0
    %2430 = vmatpush1.msra.mxu0 0.0
    %2431 = vmatprep.subr.mxu0 0.0
    %2432 = vmatpush1.msra.mxu0 0.0
    %2433 = vmatprep.mubr.f32.mxu0 0.0
    %2434 = vmatmul.mubr.f32.gmra.mrb[0].mxu0 %v2367
    %v2435 = vpop.f32.mrb[0].mxu0
    %v2436 = vadd.f32 0.0, %v2435
    %v2437 = vpop.f32.mrb[0].mxu0
    %2438 = vdwg.mxu0
    %v2439 = vld [vmem:[#allocation3] sm:$0xff]
    %v2440 = vadd.f32 %v1341, %v1414
    %v2441 = vadd.f32 %v2440, %v1487
    %v2442 = vadd.f32 %v2441, %v1560
    %v2443 = vadd.f32 %v2442, %v1633
    %v2444 = vadd.f32 %v2443, %v1706
    %v2445 = vadd.f32 %v2444, %v1779
    %v2446 = vadd.f32 %v2445, %v1852
    %v2447 = vadd.f32 %v2446, %v1925
    %v2448 = vadd.f32 %v2447, %v1998
    %v2449 = vadd.f32 %v2448, %v2071
    %v2450 = vadd.f32 %v2449, %v2144
    %v2451 = vadd.f32 %v2450, %v2217
    %v2452 = vadd.f32 %v2451, %v2290
    %v2453 = vadd.f32 %v2452, %v2363
    %v2454 = vadd.f32 %v2453, %v2436
    %v2455 = vadd.f32 %v2439, %v2454
    %2456 = vst [vmem:[#allocation3] sm:$0xff] %v2455
    // Predicated region
    $region62: #{tpu_custom_call.1} parent=1 // pred_check
      %p2457 = pneg %p112
    $region63: #{tpu_custom_call.1} parent=1 // pred_check_branch
      %2459 = sbr.rel (%p2457) target = $region65
    $region64: #{tpu_custom_call.1} parent=1 // pred_region
      %v2460 = vld [vmem:[#allocation3] sm:$0xff]
      %v2461 = vld [vmem:[#allocation15] sm:$0x1]
      %v2463 = vlaneseq
      %v2464 = vshrl.u32 %v2463, 7
      %v2465 = vsub.s32 0, %v2464
      %v2466 = vrot.slane %v2461, %v2465
      %v2468 = vadd.f32 %v2460, %v2466
      %2469 = vst [vmem:[#allocation16] sm:$0xff] %v2468
    $region65: #{tpu_custom_call.1} parent=1 // pred_fallthru
      _
    // Predicated region
    $region66: #{tpu_custom_call.1} parent=1 // pred_check
      _
    $region67: #{tpu_custom_call.1} parent=1 // pred_check_branch
      %2471 = sbr.rel (0) target = $region69
    $region68: #{tpu_custom_call.1} parent=1 // pred_region
      %s2473 = ssub.s32 128, 128
      %2474 = vsyncadd [#allocation6], %s2473
      %s2476 = sshll.u32 [#allocation16], 4
      %s2477 = int_to_ptr.vmem [resolvable:$true] %s2476
      %2479 = dma.vmem_to_hbm [thread:$0]  %s2477, 128, %s7, [#allocation6]
    $region69: #{tpu_custom_call.1} parent=1 // pred_fallthru
      _
    // Predicated region
    $region70: #{tpu_custom_call.1} parent=1 // pred_check
      _
    $region71: #{tpu_custom_call.1} parent=1 // pred_check_branch
      %2481 = sbr.rel (0) target = $region73
    $region72: #{tpu_custom_call.1} parent=1 // pred_region
      %2482 = dma.done [#allocation6], 128
    $region73: #{tpu_custom_call.1} parent=1 // pred_fallthru
      _
    %2483 = vsyncpa [#allocation5], 1
    %2484 = vsyncpa [#allocation8], 1
    %2485 = vsyncpa [#allocation11], 1
    %2486 = vsyncpa [#allocation14], 1
    %2487 = vsyncpa [#allocation6], 1

</llo_original>
